<compile_context>
chip_gen: v7x
topology: tpu7x:2x2x1
jax: 0.10.0
libtpu: 0.0.40
codegen_flags: <defaults>
</compile_context>

<pallas_src>
import functools
import math

import jax
import jax.numpy as jnp
from jax.experimental import pallas as pl
from jax.experimental.pallas import tpu as pltpu


# ----------------------------------------------------------------------------
# Helpers
# ----------------------------------------------------------------------------
def _row_tile(M, target):
    """Pick an M-tile: full M when small, else a multiple-of-8 target."""
    return M if M <= target else target


_PARALLEL = pltpu.CompilerParams(dimension_semantics=("parallel",))


# ----------------------------------------------------------------------------
# Pallas kernels
# ----------------------------------------------------------------------------
def _linear_kernel(x_ref, w_ref, b_ref, o_ref, *, activation):
    y = jnp.dot(x_ref[...], w_ref[...], preferred_element_type=jnp.float32)
    y = y + b_ref[...]
    if activation == "relu":
        y = jnp.maximum(y, 0.0)
    o_ref[...] = y.astype(o_ref.dtype)


def linear(x, w, b, activation="none", tm_target=512):
    """x: (M, K) @ w: (K, N) + b, tiled over M with the weight resident."""
    M, K = x.shape
    _, N = w.shape
    tm = _row_tile(M, tm_target)
    return pl.pallas_call(
        functools.partial(_linear_kernel, activation=activation),
        out_shape=jax.ShapeDtypeStruct((M, N), x.dtype),
        grid=(pl.cdiv(M, tm),),
        in_specs=[
            pl.BlockSpec((tm, K), lambda i: (i, 0)),
            pl.BlockSpec((K, N), lambda i: (0, 0)),
            pl.BlockSpec((1, N), lambda i: (0, 0)),
        ],
        out_specs=pl.BlockSpec((tm, N), lambda i: (i, 0)),
        compiler_params=_PARALLEL,
    )(x, w, b.reshape(1, N))


def _qkv_kernel(x_ref, w_ref, b_ref, q_ref, k_ref, v_ref, *, d):
    y = jnp.dot(x_ref[...], w_ref[...], preferred_element_type=jnp.float32)
    y = y + b_ref[...]
    q_ref[...] = y[:, :d].astype(q_ref.dtype)
    k_ref[...] = y[:, d:2 * d].astype(k_ref.dtype)
    v_ref[...] = y[:, 2 * d:].astype(v_ref.dtype)


def qkv_projection(x, wqkv, bqkv, tm_target=512):
    """Fused Wq/Wk/Wv: x (M, D) @ (D, 3D) -> three (M, D) outputs."""
    M, D = x.shape
    N3 = wqkv.shape[1]
    d = N3 // 3
    tm = _row_tile(M, tm_target)
    out_sd = jax.ShapeDtypeStruct((M, d), x.dtype)
    return pl.pallas_call(
        functools.partial(_qkv_kernel, d=d),
        out_shape=(out_sd, out_sd, out_sd),
        grid=(pl.cdiv(M, tm),),
        in_specs=[
            pl.BlockSpec((tm, D), lambda i: (i, 0)),
            pl.BlockSpec((D, N3), lambda i: (0, 0)),
            pl.BlockSpec((1, N3), lambda i: (0, 0)),
        ],
        out_specs=(
            pl.BlockSpec((tm, d), lambda i: (i, 0)),
            pl.BlockSpec((tm, d), lambda i: (i, 0)),
            pl.BlockSpec((tm, d), lambda i: (i, 0)),
        ),
        compiler_params=_PARALLEL,
    )(x, wqkv, bqkv.reshape(1, N3))


def _layernorm(h, g, b, eps):
    mu = jnp.mean(h, axis=-1, keepdims=True)
    var = jnp.mean((h - mu) ** 2, axis=-1, keepdims=True)
    return (h - mu) * jax.lax.rsqrt(var + eps) * g + b


def _matmul_add_ln_kernel(x_ref, w_ref, b_ref, r_ref, g_ref, bb_ref, o_ref,
                          *, eps):
    y = jnp.dot(x_ref[...], w_ref[...], preferred_element_type=jnp.float32)
    h = y + b_ref[...] + r_ref[...].astype(jnp.float32)
    o_ref[...] = _layernorm(h, g_ref[...], bb_ref[...], eps).astype(o_ref.dtype)


def matmul_add_layernorm(x, w, b, residual, gamma, beta, eps=1e-5,
                         tm_target=512):
    """LayerNorm((x @ w + b) + residual) fused in one kernel."""
    M, K = x.shape
    _, N = w.shape
    tm = _row_tile(M, tm_target)
    return pl.pallas_call(
        functools.partial(_matmul_add_ln_kernel, eps=eps),
        out_shape=jax.ShapeDtypeStruct((M, N), x.dtype),
        grid=(pl.cdiv(M, tm),),
        in_specs=[
            pl.BlockSpec((tm, K), lambda i: (i, 0)),
            pl.BlockSpec((K, N), lambda i: (0, 0)),
            pl.BlockSpec((1, N), lambda i: (0, 0)),
            pl.BlockSpec((tm, N), lambda i: (i, 0)),
            pl.BlockSpec((1, N), lambda i: (0, 0)),
            pl.BlockSpec((1, N), lambda i: (0, 0)),
        ],
        out_specs=pl.BlockSpec((tm, N), lambda i: (i, 0)),
        compiler_params=_PARALLEL,
    )(x, w, b.reshape(1, N), residual, gamma.reshape(1, N), beta.reshape(1, N))


def _ffn_add_ln_kernel(x_ref, w1_ref, b1_ref, w2_ref, b2_ref, g_ref, bb_ref,
                       o_ref, *, eps):
    x = x_ref[...].astype(jnp.float32)
    hid = jnp.dot(x, w1_ref[...], preferred_element_type=jnp.float32)
    hid = jnp.maximum(hid + b1_ref[...], 0.0)          # ReLU; stays in VMEM
    y = jnp.dot(hid, w2_ref[...], preferred_element_type=jnp.float32)
    h = y + b2_ref[...] + x                             # residual add
    o_ref[...] = _layernorm(h, g_ref[...], bb_ref[...], eps).astype(o_ref.dtype)


def ffn_add_layernorm(x, w1, b1, w2, b2, gamma, beta, eps=1e-5, tm_target=256):
    """LayerNorm(relu(x@w1+b1)@w2+b2 + x) fused; FFN intermediate never hits HBM."""
    M, D = x.shape
    F = w1.shape[1]
    tm = _row_tile(M, tm_target)
    return pl.pallas_call(
        functools.partial(_ffn_add_ln_kernel, eps=eps),
        out_shape=jax.ShapeDtypeStruct((M, D), x.dtype),
        grid=(pl.cdiv(M, tm),),
        in_specs=[
            pl.BlockSpec((tm, D), lambda i: (i, 0)),
            pl.BlockSpec((D, F), lambda i: (0, 0)),
            pl.BlockSpec((1, F), lambda i: (0, 0)),
            pl.BlockSpec((F, D), lambda i: (0, 0)),
            pl.BlockSpec((1, D), lambda i: (0, 0)),
            pl.BlockSpec((1, D), lambda i: (0, 0)),
            pl.BlockSpec((1, D), lambda i: (0, 0)),
        ],
        out_specs=pl.BlockSpec((tm, D), lambda i: (i, 0)),
        compiler_params=_PARALLEL,
    )(x, w1, b1.reshape(1, F), w2, b2.reshape(1, D),
      gamma.reshape(1, D), beta.reshape(1, D))


def _mha_kernel(q_ref, k_ref, v_ref, o_ref, *, n_heads, head_dim, scale):
    # One batch element per grid step; heads kept fused on the lane axis and
    # sliced statically inside the kernel (no host-side transposes).
    q = q_ref[0].astype(jnp.float32)                    # (T, D)
    k = k_ref[0].astype(jnp.float32)
    v = v_ref[0].astype(jnp.float32)
    outs = []
    for h in range(n_heads):
        lo = h * head_dim
        hi = lo + head_dim
        qh = q[:, lo:hi] * scale                        # fold scale into q
        kh = k[:, lo:hi]
        vh = v[:, lo:hi]
        # contract the last dims directly (avoids k.T transpose)
        s = jax.lax.dot_general(qh, kh, (((1,), (1,)), ((), ())),
                                preferred_element_type=jnp.float32)  # (T, T)
        m = jnp.max(s, axis=-1, keepdims=True)
        p = jnp.exp(s - m)
        l = jnp.sum(p, axis=-1, keepdims=True)
        oh = jnp.dot(p, vh, preferred_element_type=jnp.float32)
        outs.append(oh / l)
    # single lane-dense store of all heads
    o_ref[0] = jnp.concatenate(outs, axis=-1).astype(o_ref.dtype)


def multihead_attention(q, k, v, *, n_heads, scale):
    """q, k, v: (B, T, D) with heads fused along D -> (B, T, D)."""
    B, T, D = q.shape
    head_dim = D // n_heads
    spec = pl.BlockSpec((1, T, D), lambda i: (i, 0, 0))
    return pl.pallas_call(
        functools.partial(_mha_kernel, n_heads=n_heads, head_dim=head_dim,
                          scale=scale),
        out_shape=jax.ShapeDtypeStruct((B, T, D), q.dtype),
        grid=(B,),
        in_specs=[spec, spec, spec],
        out_specs=pl.BlockSpec((1, T, D), lambda i: (i, 0, 0)),
        compiler_params=_PARALLEL,
    )(q, k, v)


# ----------------------------------------------------------------------------
# Parameter construction (deterministic, synthetic)
# ----------------------------------------------------------------------------
def make_params(key, input_size, embed_dim, n_blocks, n_heads, ff_hid_dim,
                max_length):
    enc_in = input_size + 1
    ks = iter(jax.random.split(key, 8 + n_blocks * 8))

    def w(shape):
        return (0.02 * jax.random.normal(next(ks), shape)).astype(jnp.float32)

    def b(n):
        return jnp.zeros((n,), jnp.float32)

    params = {
        "mapper_w": w((input_size, enc_in)),
        "mapper_b": b(enc_in),
        "class_token": jax.random.uniform(next(ks), (1, enc_in),
                                          dtype=jnp.float32),
        "value_w": w((enc_in, embed_dim)),
        "value_b": b(embed_dim),
        "proj_w": w((embed_dim, input_size)),
        "proj_b": b(input_size),
        "mlp_w": w((input_size, 1)),
        "mlp_b": b(1),
    }

    # sinusoidal positional embedding (constant)
    pos = jnp.arange(max_length, dtype=jnp.float32)[:, None]
    i = jnp.arange(embed_dim, dtype=jnp.float32)[None, :]
    angle = pos / jnp.power(10000.0, (2.0 * jnp.floor(i / 2.0)) / embed_dim)
    pe = jnp.where((jnp.arange(embed_dim) % 2) == 0,
                   jnp.sin(angle), jnp.cos(angle)).astype(jnp.float32)
    params["pos_emb"] = pe                                   # (max_length, D)

    blocks = []
    for _ in range(n_blocks):
        blocks.append({
            "wqkv": w((embed_dim, 3 * embed_dim)),           # fused Wq|Wk|Wv
            "bqkv": b(3 * embed_dim),
            "wo": w((embed_dim, embed_dim)), "bo": b(embed_dim),
            "ln1_g": jnp.ones((embed_dim,), jnp.float32),
            "ln1_b": jnp.zeros((embed_dim,), jnp.float32),
            "ff_w1": w((embed_dim, ff_hid_dim)), "ff_b1": b(ff_hid_dim),
            "ff_w2": w((ff_hid_dim, embed_dim)), "ff_b2": b(embed_dim),
            "ln2_g": jnp.ones((embed_dim,), jnp.float32),
            "ln2_b": jnp.zeros((embed_dim,), jnp.float32),
        })
    params["blocks"] = blocks
    return params


# ----------------------------------------------------------------------------
# Forward pass (glue in plain JAX, hot paths in Pallas kernels)
# ----------------------------------------------------------------------------
def transformer_forward(params, src, *, n_heads):
    B, S, input_size = src.shape
    D = params["value_w"].shape[1]
    head_dim = D // n_heads
    scale = 1.0 / math.sqrt(float(head_dim))                 # python float

    # linear_mapper: tiny (K=4, N=5) -> plain XLA (pallas overhead > compute)
    x = src @ params["mapper_w"] + params["mapper_b"]        # (B, S, enc_in)
    enc_in = x.shape[-1]

    # prepend class token per batch element
    ct = jnp.broadcast_to(params["class_token"][None], (B, 1, enc_in))
    x = jnp.concatenate([ct, x], axis=1)                     # (B, T, enc_in)
    T = S + 1
    M = B * T

    # DataEmbedding: value linear (Pallas) + positional embedding.
    h = linear(x.reshape(M, enc_in), params["value_w"], params["value_b"])
    h = h.reshape(B, T, D) + params["pos_emb"][:T][None, :, :]
    # TODO(synk): dropout omitted (inference semantics).

    # Encoder blocks: 4 fused pallas_calls per block.
    for blk in params["blocks"]:
        h2 = h.reshape(M, D)
        q, k, v = qkv_projection(h2, blk["wqkv"], blk["bqkv"])
        attn = multihead_attention(q.reshape(B, T, D), k.reshape(B, T, D),
                                   v.reshape(B, T, D),
                                   n_heads=n_heads, scale=scale)
        # Wo projection + residual + LayerNorm, fused
        h2 = matmul_add_layernorm(attn.reshape(M, D), blk["wo"], blk["bo"],
                                  h2, blk["ln1_g"], blk["ln1_b"])
        # FFN + residual + LayerNorm, fused (intermediate stays in VMEM)
        h2 = ffn_add_layernorm(h2, blk["ff_w1"], blk["ff_b1"],
                               blk["ff_w2"], blk["ff_b2"],
                               blk["ln2_g"], blk["ln2_b"])
        h = h2.reshape(B, T, D)

    # projection (N=input_size=4, narrow lanes) + mlp head -> plain XLA
    out = h.reshape(M, D) @ params["proj_w"] + params["proj_b"]
    out = out.reshape(B, T, input_size)

    class_tok = out[:, :1, :]                                # (B, 1, input_size)
    enc_out = out[:, 1:, :]                                  # (B, S, input_size)

    logits = class_tok.reshape(B, input_size) @ params["mlp_w"] + params["mlp_b"]
    class_tok = jax.nn.sigmoid(logits).reshape(B, 1, 1)
    return enc_out, class_tok


# ----------------------------------------------------------------------------
if __name__ == "__main__":
    # small shapes: batch=2, seq=8, input_size=4, embed_dim=32, heads=4,
    # ff_hid=64, blocks=2, max_length=16
    B, S = 2, 8
    input_size, embed_dim, n_blocks = 4, 32, 2
    n_heads, ff_hid_dim, max_length = 4, 64, 16

    key = jax.random.PRNGKey(0)
    pkey, xkey = jax.random.split(key)
    params = make_params(pkey, input_size, embed_dim, n_blocks, n_heads,
                         ff_hid_dim, max_length)
    src = jax.random.normal(xkey, (B, S, input_size), dtype=jnp.float32)

    fwd = jax.jit(functools.partial(transformer_forward, n_heads=n_heads))
    enc_out, class_token = fwd(params, src)
    jax.block_until_ready(enc_out)
    jax.block_until_ready(class_token)

    assert enc_out.shape == (B, S, input_size)
    assert class_token.shape == (B, 1, 1)
    assert bool(jnp.all(jnp.isfinite(enc_out)))
    assert bool(jnp.all(jnp.isfinite(class_token)))
    print("KERNEL_OK")
</pallas_src>

<mosaic_0001>
module attributes {stable_mosaic.version = 11 : i64} {
  func.func @_linear_kernel(%arg0: i32, %arg1: memref<18x5xf32, #tpu.memory_space<vmem>>, %arg2: memref<5x32xf32, #tpu.memory_space<vmem>>, %arg3: memref<1x32xf32, #tpu.memory_space<vmem>>, %arg4: memref<18x32xf32, #tpu.memory_space<vmem>>) attributes {dimension_semantics = [#tpu.dimension_semantics<parallel>], iteration_bounds = array<i64: 1>, scalar_prefetch = 0 : i64, scratch_operands = 0 : i64, tpu.core_type = #tpu.core_type<tc>, window_params = [{transform_indices = @transform_0, window_bounds = array<i64: 18, 5>}, {pipeline_mode = #tpu.pipeline_mode<synchronous>, transform_indices = @transform_1, window_bounds = array<i64: 5, 32>}, {pipeline_mode = #tpu.pipeline_mode<synchronous>, transform_indices = @transform_2, window_bounds = array<i64: 1, 32>}, {transform_indices = @transform_3, window_bounds = array<i64: 18, 32>}]} {
    %c0 = arith.constant 0 : index
    %c0_0 = arith.constant 0 : index
    %0 = vector.load %arg1[%c0, %c0_0] : memref<18x5xf32, #tpu.memory_space<vmem>>, vector<18x5xf32>
    %c0_1 = arith.constant 0 : index
    %c0_2 = arith.constant 0 : index
    %1 = vector.load %arg2[%c0_1, %c0_2] : memref<5x32xf32, #tpu.memory_space<vmem>>, vector<5x32xf32>
    %cst = arith.constant dense<0.000000e+00> : vector<18x32xf32>
    %2 = tpu.matmul %0, %1, %cst {dimension_numbers = #tpu.dot_dimension_numbers<[1], [0], [0], [1], [0, 0, 1, 1], [], []>} : vector<18x5xf32>, vector<5x32xf32>, vector<18x32xf32> -> vector<18x32xf32>
    %c0_3 = arith.constant 0 : index
    %c0_4 = arith.constant 0 : index
    %3 = vector.load %arg3[%c0_3, %c0_4] : memref<1x32xf32, #tpu.memory_space<vmem>>, vector<1x32xf32>
    %4 = vector.broadcast %3 : vector<1x32xf32> to vector<18x32xf32>
    %5 = arith.addf %2, %4 : vector<18x32xf32>
    %c0_5 = arith.constant 0 : index
    %c0_6 = arith.constant 0 : index
    %6 = vector.load %arg4[%c0_5, %c0_6] : memref<18x32xf32, #tpu.memory_space<vmem>>, vector<18x32xf32>
    tpu.vector_store %arg4[%c0_5, %c0_6], %5 {strides = array<i32>} : memref<18x32xf32, #tpu.memory_space<vmem>>, vector<18x32xf32>,
    return
  }
  func.func @transform_0(%arg0: i32) -> (i32, i32) {
    %c0_i32 = arith.constant 0 : i32
    %c0_i32_0 = arith.constant 0 : i32
    return %arg0, %c0_i32 : i32, i32
  }
  func.func @transform_1(%arg0: i32) -> (i32, i32) {
    %c0_i32 = arith.constant 0 : i32
    %c0_i32_0 = arith.constant 0 : i32
    %c0_i32_1 = arith.constant 0 : i32
    return %c0_i32, %c0_i32_0 : i32, i32
  }
  func.func @transform_2(%arg0: i32) -> (i32, i32) {
    %c0_i32 = arith.constant 0 : i32
    %c0_i32_0 = arith.constant 0 : i32
    %c0_i32_1 = arith.constant 0 : i32
    return %c0_i32, %c0_i32_0 : i32, i32
  }
  func.func @transform_3(%arg0: i32) -> (i32, i32) {
    %c0_i32 = arith.constant 0 : i32
    %c0_i32_0 = arith.constant 0 : i32
    return %arg0, %c0_i32 : i32, i32
  }
}

module attributes {stable_mosaic.version = 11 : i64} {
  func.func @_mha_kernel(%arg0: i32, %arg1: memref<1x9x32xf32, #tpu.memory_space<vmem>>, %arg2: memref<1x9x32xf32, #tpu.memory_space<vmem>>, %arg3: memref<1x9x32xf32, #tpu.memory_space<vmem>>, %arg4: memref<1x9x32xf32, #tpu.memory_space<vmem>>) attributes {dimension_semantics = [#tpu.dimension_semantics<parallel>], iteration_bounds = array<i64: 2>, scalar_prefetch = 0 : i64, scratch_operands = 0 : i64, tpu.core_type = #tpu.core_type<tc>, window_params = [{transform_indices = @transform_0, window_bounds = array<i64: 1, 9, 32>}, {transform_indices = @transform_1, window_bounds = array<i64: 1, 9, 32>}, {transform_indices = @transform_2, window_bounds = array<i64: 1, 9, 32>}, {transform_indices = @transform_3, window_bounds = array<i64: 1, 9, 32>}]} {
    %c0 = arith.constant 0 : index
    %c0_0 = arith.constant 0 : index
    %c0_1 = arith.constant 0 : index
    %0 = vector.load %arg1[%c0, %c0_0, %c0_1] : memref<1x9x32xf32, #tpu.memory_space<vmem>>, vector<1x9x32xf32>
    %1 = vector.shape_cast %0 : vector<1x9x32xf32> to vector<9x32xf32>
    %c0_2 = arith.constant 0 : index
    %c0_3 = arith.constant 0 : index
    %c0_4 = arith.constant 0 : index
    %2 = vector.load %arg2[%c0_2, %c0_3, %c0_4] : memref<1x9x32xf32, #tpu.memory_space<vmem>>, vector<1x9x32xf32>
    %3 = vector.shape_cast %2 : vector<1x9x32xf32> to vector<9x32xf32>
    %c0_5 = arith.constant 0 : index
    %c0_6 = arith.constant 0 : index
    %c0_7 = arith.constant 0 : index
    %4 = vector.load %arg3[%c0_5, %c0_6, %c0_7] : memref<1x9x32xf32, #tpu.memory_space<vmem>>, vector<1x9x32xf32>
    %5 = vector.shape_cast %4 : vector<1x9x32xf32> to vector<9x32xf32>
    %6 = vector.extract_strided_slice %1 {offsets = [0, 0], sizes = [9, 8], strides = [1, 1]} : vector<9x32xf32> to vector<9x8xf32>
    %cst = arith.constant 0.353553385 : f32
    %7 = vector.broadcast %cst : f32 to vector<9x8xf32>
    %8 = arith.mulf %6, %7 : vector<9x8xf32>
    %9 = vector.extract_strided_slice %3 {offsets = [0, 0], sizes = [9, 8], strides = [1, 1]} : vector<9x32xf32> to vector<9x8xf32>
    %10 = vector.extract_strided_slice %5 {offsets = [0, 0], sizes = [9, 8], strides = [1, 1]} : vector<9x32xf32> to vector<9x8xf32>
    %cst_8 = arith.constant dense<0.000000e+00> : vector<9x9xf32>
    %11 = tpu.matmul %8, %9, %cst_8 {dimension_numbers = #tpu.dot_dimension_numbers<[1], [1], [0], [0], [0, 0, 1, 0], [], []>} : vector<9x8xf32>, vector<9x8xf32>, vector<9x9xf32> -> vector<9x9xf32>
    %cst_9 = arith.constant dense<0xFF800000> : vector<9xf32>
    %12 = vector.multi_reduction <maximumf>, %11, %cst_9 [1] : vector<9x9xf32> to vector<9xf32>
    %13 = vector.shape_cast %12 : vector<9xf32> to vector<9x1xf32>
    %14 = vector.broadcast %13 : vector<9x1xf32> to vector<9x9xf32>
    %15 = arith.subf %11, %14 : vector<9x9xf32>
    %16 = math.exp %15 : vector<9x9xf32>
    %cst_10 = arith.constant dense<0.000000e+00> : vector<9xf32>
    %17 = vector.multi_reduction <add>, %16, %cst_10 [1] : vector<9x9xf32> to vector<9xf32>
    %18 = vector.shape_cast %17 : vector<9xf32> to vector<9x1xf32>
    %cst_11 = arith.constant dense<0.000000e+00> : vector<9x8xf32>
    %19 = tpu.matmul %16, %10, %cst_11 {dimension_numbers = #tpu.dot_dimension_numbers<[1], [0], [0], [1], [0, 0, 1, 1], [], []>} : vector<9x9xf32>, vector<9x8xf32>, vector<9x8xf32> -> vector<9x8xf32>
    %20 = vector.broadcast %18 : vector<9x1xf32> to vector<9x8xf32>
    %21 = arith.divf %19, %20 : vector<9x8xf32>
    %22 = vector.extract_strided_slice %1 {offsets = [0, 8], sizes = [9, 8], strides = [1, 1]} : vector<9x32xf32> to vector<9x8xf32>
    %cst_12 = arith.constant 0.353553385 : f32
    %23 = vector.broadcast %cst_12 : f32 to vector<9x8xf32>
    %24 = arith.mulf %22, %23 : vector<9x8xf32>
    %25 = vector.extract_strided_slice %3 {offsets = [0, 8], sizes = [9, 8], strides = [1, 1]} : vector<9x32xf32> to vector<9x8xf32>
    %26 = vector.extract_strided_slice %5 {offsets = [0, 8], sizes = [9, 8], strides = [1, 1]} : vector<9x32xf32> to vector<9x8xf32>
    %cst_13 = arith.constant dense<0.000000e+00> : vector<9x9xf32>
    %27 = tpu.matmul %24, %25, %cst_13 {dimension_numbers = #tpu.dot_dimension_numbers<[1], [1], [0], [0], [0, 0, 1, 0], [], []>} : vector<9x8xf32>, vector<9x8xf32>, vector<9x9xf32> -> vector<9x9xf32>
    %cst_14 = arith.constant dense<0xFF800000> : vector<9xf32>
    %28 = vector.multi_reduction <maximumf>, %27, %cst_14 [1] : vector<9x9xf32> to vector<9xf32>
    %29 = vector.shape_cast %28 : vector<9xf32> to vector<9x1xf32>
    %30 = vector.broadcast %29 : vector<9x1xf32> to vector<9x9xf32>
    %31 = arith.subf %27, %30 : vector<9x9xf32>
    %32 = math.exp %31 : vector<9x9xf32>
    %cst_15 = arith.constant dense<0.000000e+00> : vector<9xf32>
    %33 = vector.multi_reduction <add>, %32, %cst_15 [1] : vector<9x9xf32> to vector<9xf32>
    %34 = vector.shape_cast %33 : vector<9xf32> to vector<9x1xf32>
    %cst_16 = arith.constant dense<0.000000e+00> : vector<9x8xf32>
    %35 = tpu.matmul %32, %26, %cst_16 {dimension_numbers = #tpu.dot_dimension_numbers<[1], [0], [0], [1], [0, 0, 1, 1], [], []>} : vector<9x9xf32>, vector<9x8xf32>, vector<9x8xf32> -> vector<9x8xf32>
    %36 = vector.broadcast %34 : vector<9x1xf32> to vector<9x8xf32>
    %37 = arith.divf %35, %36 : vector<9x8xf32>
    %38 = vector.extract_strided_slice %1 {offsets = [0, 16], sizes = [9, 8], strides = [1, 1]} : vector<9x32xf32> to vector<9x8xf32>
    %cst_17 = arith.constant 0.353553385 : f32
    %39 = vector.broadcast %cst_17 : f32 to vector<9x8xf32>
    %40 = arith.mulf %38, %39 : vector<9x8xf32>
    %41 = vector.extract_strided_slice %3 {offsets = [0, 16], sizes = [9, 8], strides = [1, 1]} : vector<9x32xf32> to vector<9x8xf32>
    %42 = vector.extract_strided_slice %5 {offsets = [0, 16], sizes = [9, 8], strides = [1, 1]} : vector<9x32xf32> to vector<9x8xf32>
    %cst_18 = arith.constant dense<0.000000e+00> : vector<9x9xf32>
    %43 = tpu.matmul %40, %41, %cst_18 {dimension_numbers = #tpu.dot_dimension_numbers<[1], [1], [0], [0], [0, 0, 1, 0], [], []>} : vector<9x8xf32>, vector<9x8xf32>, vector<9x9xf32> -> vector<9x9xf32>
    %cst_19 = arith.constant dense<0xFF800000> : vector<9xf32>
    %44 = vector.multi_reduction <maximumf>, %43, %cst_19 [1] : vector<9x9xf32> to vector<9xf32>
    %45 = vector.shape_cast %44 : vector<9xf32> to vector<9x1xf32>
    %46 = vector.broadcast %45 : vector<9x1xf32> to vector<9x9xf32>
    %47 = arith.subf %43, %46 : vector<9x9xf32>
    %48 = math.exp %47 : vector<9x9xf32>
    %cst_20 = arith.constant dense<0.000000e+00> : vector<9xf32>
    %49 = vector.multi_reduction <add>, %48, %cst_20 [1] : vector<9x9xf32> to vector<9xf32>
    %50 = vector.shape_cast %49 : vector<9xf32> to vector<9x1xf32>
    %cst_21 = arith.constant dense<0.000000e+00> : vector<9x8xf32>
    %51 = tpu.matmul %48, %42, %cst_21 {dimension_numbers = #tpu.dot_dimension_numbers<[1], [0], [0], [1], [0, 0, 1, 1], [], []>} : vector<9x9xf32>, vector<9x8xf32>, vector<9x8xf32> -> vector<9x8xf32>
    %52 = vector.broadcast %50 : vector<9x1xf32> to vector<9x8xf32>
    %53 = arith.divf %51, %52 : vector<9x8xf32>
    %54 = vector.extract_strided_slice %1 {offsets = [0, 24], sizes = [9, 8], strides = [1, 1]} : vector<9x32xf32> to vector<9x8xf32>
    %cst_22 = arith.constant 0.353553385 : f32
    %55 = vector.broadcast %cst_22 : f32 to vector<9x8xf32>
    %56 = arith.mulf %54, %55 : vector<9x8xf32>
    %57 = vector.extract_strided_slice %3 {offsets = [0, 24], sizes = [9, 8], strides = [1, 1]} : vector<9x32xf32> to vector<9x8xf32>
    %58 = vector.extract_strided_slice %5 {offsets = [0, 24], sizes = [9, 8], strides = [1, 1]} : vector<9x32xf32> to vector<9x8xf32>
    %cst_23 = arith.constant dense<0.000000e+00> : vector<9x9xf32>
    %59 = tpu.matmul %56, %57, %cst_23 {dimension_numbers = #tpu.dot_dimension_numbers<[1], [1], [0], [0], [0, 0, 1, 0], [], []>} : vector<9x8xf32>, vector<9x8xf32>, vector<9x9xf32> -> vector<9x9xf32>
    %cst_24 = arith.constant dense<0xFF800000> : vector<9xf32>
    %60 = vector.multi_reduction <maximumf>, %59, %cst_24 [1] : vector<9x9xf32> to vector<9xf32>
    %61 = vector.shape_cast %60 : vector<9xf32> to vector<9x1xf32>
    %62 = vector.broadcast %61 : vector<9x1xf32> to vector<9x9xf32>
    %63 = arith.subf %59, %62 : vector<9x9xf32>
    %64 = math.exp %63 : vector<9x9xf32>
    %cst_25 = arith.constant dense<0.000000e+00> : vector<9xf32>
    %65 = vector.multi_reduction <add>, %64, %cst_25 [1] : vector<9x9xf32> to vector<9xf32>
    %66 = vector.shape_cast %65 : vector<9xf32> to vector<9x1xf32>
    %cst_26 = arith.constant dense<0.000000e+00> : vector<9x8xf32>
    %67 = tpu.matmul %64, %58, %cst_26 {dimension_numbers = #tpu.dot_dimension_numbers<[1], [0], [0], [1], [0, 0, 1, 1], [], []>} : vector<9x9xf32>, vector<9x8xf32>, vector<9x8xf32> -> vector<9x8xf32>
    %68 = vector.broadcast %66 : vector<9x1xf32> to vector<9x8xf32>
    %69 = arith.divf %67, %68 : vector<9x8xf32>
    %70 = tpu.concatenate %21, %37, %53, %69 in 1 : vector<9x8xf32>, vector<9x8xf32>, vector<9x8xf32>, vector<9x8xf32> -> vector<9x32xf32>
    %c0_27 = arith.constant 0 : index
    %c0_28 = arith.constant 0 : index
    %c0_29 = arith.constant 0 : index
    %71 = vector.load %arg4[%c0_27, %c0_28, %c0_29] : memref<1x9x32xf32, #tpu.memory_space<vmem>>, vector<1x9x32xf32>
    %72 = vector.shape_cast %71 : vector<1x9x32xf32> to vector<9x32xf32>
    %73 = vector.shape_cast %70 : vector<9x32xf32> to vector<1x9x32xf32>
    tpu.vector_store %arg4[%c0_27, %c0_28, %c0_29], %73 {strides = array<i32>} : memref<1x9x32xf32, #tpu.memory_space<vmem>>, vector<1x9x32xf32>,
    return
  }
  func.func @transform_0(%arg0: i32) -> (i32, i32, i32) {
    %c0_i32 = arith.constant 0 : i32
    %c0_i32_0 = arith.constant 0 : i32
    %c0_i32_1 = arith.constant 0 : i32
    return %arg0, %c0_i32, %c0_i32_0 : i32, i32, i32
  }
  func.func @transform_1(%arg0: i32) -> (i32, i32, i32) {
    %c0_i32 = arith.constant 0 : i32
    %c0_i32_0 = arith.constant 0 : i32
    %c0_i32_1 = arith.constant 0 : i32
    return %arg0, %c0_i32, %c0_i32_0 : i32, i32, i32
  }
  func.func @transform_2(%arg0: i32) -> (i32, i32, i32) {
    %c0_i32 = arith.constant 0 : i32
    %c0_i32_0 = arith.constant 0 : i32
    %c0_i32_1 = arith.constant 0 : i32
    return %arg0, %c0_i32, %c0_i32_0 : i32, i32, i32
  }
  func.func @transform_3(%arg0: i32) -> (i32, i32, i32) {
    %c0_i32 = arith.constant 0 : i32
    %c0_i32_0 = arith.constant 0 : i32
    %c0_i32_1 = arith.constant 0 : i32
    return %arg0, %c0_i32, %c0_i32_0 : i32, i32, i32
  }
}

module attributes {stable_mosaic.version = 11 : i64} {
  func.func @_qkv_kernel(%arg0: i32, %arg1: memref<18x32xf32, #tpu.memory_space<vmem>>, %arg2: memref<32x96xf32, #tpu.memory_space<vmem>>, %arg3: memref<1x96xf32, #tpu.memory_space<vmem>>, %arg4: memref<18x32xf32, #tpu.memory_space<vmem>>, %arg5: memref<18x32xf32, #tpu.memory_space<vmem>>, %arg6: memref<18x32xf32, #tpu.memory_space<vmem>>) attributes {dimension_semantics = [#tpu.dimension_semantics<parallel>], iteration_bounds = array<i64: 1>, scalar_prefetch = 0 : i64, scratch_operands = 0 : i64, tpu.core_type = #tpu.core_type<tc>, window_params = [{transform_indices = @transform_0, window_bounds = array<i64: 18, 32>}, {pipeline_mode = #tpu.pipeline_mode<synchronous>, transform_indices = @transform_1, window_bounds = array<i64: 32, 96>}, {pipeline_mode = #tpu.pipeline_mode<synchronous>, transform_indices = @transform_2, window_bounds = array<i64: 1, 96>}, {transform_indices = @transform_3, window_bounds = array<i64: 18, 32>}, {transform_indices = @transform_4, window_bounds = array<i64: 18, 32>}, {transform_indices = @transform_5, window_bounds = array<i64: 18, 32>}]} {
    %c0 = arith.constant 0 : index
    %c0_0 = arith.constant 0 : index
    %0 = vector.load %arg1[%c0, %c0_0] : memref<18x32xf32, #tpu.memory_space<vmem>>, vector<18x32xf32>
    %c0_1 = arith.constant 0 : index
    %c0_2 = arith.constant 0 : index
    %1 = vector.load %arg2[%c0_1, %c0_2] : memref<32x96xf32, #tpu.memory_space<vmem>>, vector<32x96xf32>
    %cst = arith.constant dense<0.000000e+00> : vector<18x96xf32>
    %2 = tpu.matmul %0, %1, %cst {dimension_numbers = #tpu.dot_dimension_numbers<[1], [0], [0], [1], [0, 0, 1, 1], [], []>} : vector<18x32xf32>, vector<32x96xf32>, vector<18x96xf32> -> vector<18x96xf32>
    %c0_3 = arith.constant 0 : index
    %c0_4 = arith.constant 0 : index
    %3 = vector.load %arg3[%c0_3, %c0_4] : memref<1x96xf32, #tpu.memory_space<vmem>>, vector<1x96xf32>
    %4 = vector.broadcast %3 : vector<1x96xf32> to vector<18x96xf32>
    %5 = arith.addf %2, %4 : vector<18x96xf32>
    %6 = vector.extract_strided_slice %5 {offsets = [0, 0], sizes = [18, 32], strides = [1, 1]} : vector<18x96xf32> to vector<18x32xf32>
    %c0_5 = arith.constant 0 : index
    %c0_6 = arith.constant 0 : index
    %7 = vector.load %arg4[%c0_5, %c0_6] : memref<18x32xf32, #tpu.memory_space<vmem>>, vector<18x32xf32>
    tpu.vector_store %arg4[%c0_5, %c0_6], %6 {strides = array<i32>} : memref<18x32xf32, #tpu.memory_space<vmem>>, vector<18x32xf32>,
    %8 = vector.extract_strided_slice %5 {offsets = [0, 32], sizes = [18, 32], strides = [1, 1]} : vector<18x96xf32> to vector<18x32xf32>
    %c0_7 = arith.constant 0 : index
    %c0_8 = arith.constant 0 : index
    %9 = vector.load %arg5[%c0_7, %c0_8] : memref<18x32xf32, #tpu.memory_space<vmem>>, vector<18x32xf32>
    tpu.vector_store %arg5[%c0_7, %c0_8], %8 {strides = array<i32>} : memref<18x32xf32, #tpu.memory_space<vmem>>, vector<18x32xf32>,
    %10 = vector.extract_strided_slice %5 {offsets = [0, 64], sizes = [18, 32], strides = [1, 1]} : vector<18x96xf32> to vector<18x32xf32>
    %c0_9 = arith.constant 0 : index
    %c0_10 = arith.constant 0 : index
    %11 = vector.load %arg6[%c0_9, %c0_10] : memref<18x32xf32, #tpu.memory_space<vmem>>, vector<18x32xf32>
    tpu.vector_store %arg6[%c0_9, %c0_10], %10 {strides = array<i32>} : memref<18x32xf32, #tpu.memory_space<vmem>>, vector<18x32xf32>,
    return
  }
  func.func @transform_0(%arg0: i32) -> (i32, i32) {
    %c0_i32 = arith.constant 0 : i32
    %c0_i32_0 = arith.constant 0 : i32
    return %arg0, %c0_i32 : i32, i32
  }
  func.func @transform_1(%arg0: i32) -> (i32, i32) {
    %c0_i32 = arith.constant 0 : i32
    %c0_i32_0 = arith.constant 0 : i32
    %c0_i32_1 = arith.constant 0 : i32
    return %c0_i32, %c0_i32_0 : i32, i32
  }
  func.func @transform_2(%arg0: i32) -> (i32, i32) {
    %c0_i32 = arith.constant 0 : i32
    %c0_i32_0 = arith.constant 0 : i32
    %c0_i32_1 = arith.constant 0 : i32
    return %c0_i32, %c0_i32_0 : i32, i32
  }
  func.func @transform_3(%arg0: i32) -> (i32, i32) {
    %c0_i32 = arith.constant 0 : i32
    %c0_i32_0 = arith.constant 0 : i32
    return %arg0, %c0_i32 : i32, i32
  }
  func.func @transform_4(%arg0: i32) -> (i32, i32) {
    %c0_i32 = arith.constant 0 : i32
    %c0_i32_0 = arith.constant 0 : i32
    return %arg0, %c0_i32 : i32, i32
  }
  func.func @transform_5(%arg0: i32) -> (i32, i32) {
    %c0_i32 = arith.constant 0 : i32
    %c0_i32_0 = arith.constant 0 : i32
    return %arg0, %c0_i32 : i32, i32
  }
}

module attributes {stable_mosaic.version = 11 : i64} {
  func.func @_matmul_add_ln_kernel(%arg0: i32, %arg1: memref<18x32xf32, #tpu.memory_space<vmem>>, %arg2: memref<32x32xf32, #tpu.memory_space<vmem>>, %arg3: memref<1x32xf32, #tpu.memory_space<vmem>>, %arg4: memref<18x32xf32, #tpu.memory_space<vmem>>, %arg5: memref<1x32xf32, #tpu.memory_space<vmem>>, %arg6: memref<1x32xf32, #tpu.memory_space<vmem>>, %arg7: memref<18x32xf32, #tpu.memory_space<vmem>>) attributes {dimension_semantics = [#tpu.dimension_semantics<parallel>], iteration_bounds = array<i64: 1>, scalar_prefetch = 0 : i64, scratch_operands = 0 : i64, tpu.core_type = #tpu.core_type<tc>, window_params = [{transform_indices = @transform_0, window_bounds = array<i64: 18, 32>}, {pipeline_mode = #tpu.pipeline_mode<synchronous>, transform_indices = @transform_1, window_bounds = array<i64: 32, 32>}, {pipeline_mode = #tpu.pipeline_mode<synchronous>, transform_indices = @transform_2, window_bounds = array<i64: 1, 32>}, {transform_indices = @transform_3, window_bounds = array<i64: 18, 32>}, {pipeline_mode = #tpu.pipeline_mode<synchronous>, transform_indices = @transform_4, window_bounds = array<i64: 1, 32>}, {pipeline_mode = #tpu.pipeline_mode<synchronous>, transform_indices = @transform_5, window_bounds = array<i64: 1, 32>}, {transform_indices = @transform_6, window_bounds = array<i64: 18, 32>}]} {
    %c0 = arith.constant 0 : index
    %c0_0 = arith.constant 0 : index
    %0 = vector.load %arg1[%c0, %c0_0] : memref<18x32xf32, #tpu.memory_space<vmem>>, vector<18x32xf32>
    %c0_1 = arith.constant 0 : index
    %c0_2 = arith.constant 0 : index
    %1 = vector.load %arg2[%c0_1, %c0_2] : memref<32x32xf32, #tpu.memory_space<vmem>>, vector<32x32xf32>
    %cst = arith.constant dense<0.000000e+00> : vector<18x32xf32>
    %2 = tpu.matmul %0, %1, %cst {dimension_numbers = #tpu.dot_dimension_numbers<[1], [0], [0], [1], [0, 0, 1, 1], [], []>} : vector<18x32xf32>, vector<32x32xf32>, vector<18x32xf32> -> vector<18x32xf32>
    %c0_3 = arith.constant 0 : index
    %c0_4 = arith.constant 0 : index
    %3 = vector.load %arg3[%c0_3, %c0_4] : memref<1x32xf32, #tpu.memory_space<vmem>>, vector<1x32xf32>
    %4 = vector.broadcast %3 : vector<1x32xf32> to vector<18x32xf32>
    %5 = arith.addf %2, %4 : vector<18x32xf32>
    %c0_5 = arith.constant 0 : index
    %c0_6 = arith.constant 0 : index
    %6 = vector.load %arg4[%c0_5, %c0_6] : memref<18x32xf32, #tpu.memory_space<vmem>>, vector<18x32xf32>
    %7 = arith.addf %5, %6 : vector<18x32xf32>
    %c0_7 = arith.constant 0 : index
    %c0_8 = arith.constant 0 : index
    %8 = vector.load %arg5[%c0_7, %c0_8] : memref<1x32xf32, #tpu.memory_space<vmem>>, vector<1x32xf32>
    %c0_9 = arith.constant 0 : index
    %c0_10 = arith.constant 0 : index
    %9 = vector.load %arg6[%c0_9, %c0_10] : memref<1x32xf32, #tpu.memory_space<vmem>>, vector<1x32xf32>
    %cst_11 = arith.constant dense<0.000000e+00> : vector<18xf32>
    %10 = vector.multi_reduction <add>, %7, %cst_11 [1] : vector<18x32xf32> to vector<18xf32>
    %11 = vector.shape_cast %10 : vector<18xf32> to vector<18x1xf32>
    %cst_12 = arith.constant 3.200000e+01 : f32
    %12 = vector.broadcast %cst_12 : f32 to vector<18x1xf32>
    %13 = arith.divf %11, %12 : vector<18x1xf32>
    %14 = vector.broadcast %13 : vector<18x1xf32> to vector<18x32xf32>
    %15 = arith.subf %7, %14 : vector<18x32xf32>
    %16 = arith.mulf %15, %15 : vector<18x32xf32>
    %cst_13 = arith.constant dense<0.000000e+00> : vector<18xf32>
    %17 = vector.multi_reduction <add>, %16, %cst_13 [1] : vector<18x32xf32> to vector<18xf32>
    %18 = vector.shape_cast %17 : vector<18xf32> to vector<18x1xf32>
    %cst_14 = arith.constant 3.200000e+01 : f32
    %19 = vector.broadcast %cst_14 : f32 to vector<18x1xf32>
    %20 = arith.divf %18, %19 : vector<18x1xf32>
    %21 = vector.broadcast %13 : vector<18x1xf32> to vector<18x32xf32>
    %22 = arith.subf %7, %21 : vector<18x32xf32>
    %cst_15 = arith.constant 9.99999974E-6 : f32
    %23 = vector.broadcast %cst_15 : f32 to vector<18x1xf32>
    %24 = arith.addf %20, %23 : vector<18x1xf32>
    %25 = math.rsqrt %24 : vector<18x1xf32>
    %26 = vector.broadcast %25 : vector<18x1xf32> to vector<18x32xf32>
    %27 = arith.mulf %22, %26 : vector<18x32xf32>
    %28 = vector.broadcast %8 : vector<1x32xf32> to vector<18x32xf32>
    %29 = arith.mulf %27, %28 : vector<18x32xf32>
    %30 = vector.broadcast %9 : vector<1x32xf32> to vector<18x32xf32>
    %31 = arith.addf %29, %30 : vector<18x32xf32>
    %c0_16 = arith.constant 0 : index
    %c0_17 = arith.constant 0 : index
    %32 = vector.load %arg7[%c0_16, %c0_17] : memref<18x32xf32, #tpu.memory_space<vmem>>, vector<18x32xf32>
    tpu.vector_store %arg7[%c0_16, %c0_17], %31 {strides = array<i32>} : memref<18x32xf32, #tpu.memory_space<vmem>>, vector<18x32xf32>,
    return
  }
  func.func @transform_0(%arg0: i32) -> (i32, i32) {
    %c0_i32 = arith.constant 0 : i32
    %c0_i32_0 = arith.constant 0 : i32
    return %arg0, %c0_i32 : i32, i32
  }
  func.func @transform_1(%arg0: i32) -> (i32, i32) {
    %c0_i32 = arith.constant 0 : i32
    %c0_i32_0 = arith.constant 0 : i32
    %c0_i32_1 = arith.constant 0 : i32
    return %c0_i32, %c0_i32_0 : i32, i32
  }
  func.func @transform_2(%arg0: i32) -> (i32, i32) {
    %c0_i32 = arith.constant 0 : i32
    %c0_i32_0 = arith.constant 0 : i32
    %c0_i32_1 = arith.constant 0 : i32
    return %c0_i32, %c0_i32_0 : i32, i32
  }
  func.func @transform_3(%arg0: i32) -> (i32, i32) {
    %c0_i32 = arith.constant 0 : i32
    %c0_i32_0 = arith.constant 0 : i32
    return %arg0, %c0_i32 : i32, i32
  }
  func.func @transform_4(%arg0: i32) -> (i32, i32) {
    %c0_i32 = arith.constant 0 : i32
    %c0_i32_0 = arith.constant 0 : i32
    %c0_i32_1 = arith.constant 0 : i32
    return %c0_i32, %c0_i32_0 : i32, i32
  }
  func.func @transform_5(%arg0: i32) -> (i32, i32) {
    %c0_i32 = arith.constant 0 : i32
    %c0_i32_0 = arith.constant 0 : i32
    %c0_i32_1 = arith.constant 0 : i32
    return %c0_i32, %c0_i32_0 : i32, i32
  }
  func.func @transform_6(%arg0: i32) -> (i32, i32) {
    %c0_i32 = arith.constant 0 : i32
    %c0_i32_0 = arith.constant 0 : i32
    return %arg0, %c0_i32 : i32, i32
  }
}

module attributes {stable_mosaic.version = 11 : i64} {
  func.func @_ffn_add_ln_kernel(%arg0: i32, %arg1: memref<18x32xf32, #tpu.memory_space<vmem>>, %arg2: memref<32x64xf32, #tpu.memory_space<vmem>>, %arg3: memref<1x64xf32, #tpu.memory_space<vmem>>, %arg4: memref<64x32xf32, #tpu.memory_space<vmem>>, %arg5: memref<1x32xf32, #tpu.memory_space<vmem>>, %arg6: memref<1x32xf32, #tpu.memory_space<vmem>>, %arg7: memref<1x32xf32, #tpu.memory_space<vmem>>, %arg8: memref<18x32xf32, #tpu.memory_space<vmem>>) attributes {dimension_semantics = [#tpu.dimension_semantics<parallel>], iteration_bounds = array<i64: 1>, scalar_prefetch = 0 : i64, scratch_operands = 0 : i64, tpu.core_type = #tpu.core_type<tc>, window_params = [{transform_indices = @transform_0, window_bounds = array<i64: 18, 32>}, {pipeline_mode = #tpu.pipeline_mode<synchronous>, transform_indices = @transform_1, window_bounds = array<i64: 32, 64>}, {pipeline_mode = #tpu.pipeline_mode<synchronous>, transform_indices = @transform_2, window_bounds = array<i64: 1, 64>}, {pipeline_mode = #tpu.pipeline_mode<synchronous>, transform_indices = @transform_3, window_bounds = array<i64: 64, 32>}, {pipeline_mode = #tpu.pipeline_mode<synchronous>, transform_indices = @transform_4, window_bounds = array<i64: 1, 32>}, {pipeline_mode = #tpu.pipeline_mode<synchronous>, transform_indices = @transform_5, window_bounds = array<i64: 1, 32>}, {pipeline_mode = #tpu.pipeline_mode<synchronous>, transform_indices = @transform_6, window_bounds = array<i64: 1, 32>}, {transform_indices = @transform_7, window_bounds = array<i64: 18, 32>}]} {
    %c0 = arith.constant 0 : index
    %c0_0 = arith.constant 0 : index
    %0 = vector.load %arg1[%c0, %c0_0] : memref<18x32xf32, #tpu.memory_space<vmem>>, vector<18x32xf32>
    %c0_1 = arith.constant 0 : index
    %c0_2 = arith.constant 0 : index
    %1 = vector.load %arg2[%c0_1, %c0_2] : memref<32x64xf32, #tpu.memory_space<vmem>>, vector<32x64xf32>
    %cst = arith.constant dense<0.000000e+00> : vector<18x64xf32>
    %2 = tpu.matmul %0, %1, %cst {dimension_numbers = #tpu.dot_dimension_numbers<[1], [0], [0], [1], [0, 0, 1, 1], [], []>} : vector<18x32xf32>, vector<32x64xf32>, vector<18x64xf32> -> vector<18x64xf32>
    %c0_3 = arith.constant 0 : index
    %c0_4 = arith.constant 0 : index
    %3 = vector.load %arg3[%c0_3, %c0_4] : memref<1x64xf32, #tpu.memory_space<vmem>>, vector<1x64xf32>
    %4 = vector.broadcast %3 : vector<1x64xf32> to vector<18x64xf32>
    %5 = arith.addf %2, %4 : vector<18x64xf32>
    %cst_5 = arith.constant 0.000000e+00 : f32
    %6 = vector.broadcast %cst_5 : f32 to vector<18x64xf32>
    %7 = arith.maximumf %5, %6 : vector<18x64xf32>
    %c0_6 = arith.constant 0 : index
    %c0_7 = arith.constant 0 : index
    %8 = vector.load %arg4[%c0_6, %c0_7] : memref<64x32xf32, #tpu.memory_space<vmem>>, vector<64x32xf32>
    %cst_8 = arith.constant dense<0.000000e+00> : vector<18x32xf32>
    %9 = tpu.matmul %7, %8, %cst_8 {dimension_numbers = #tpu.dot_dimension_numbers<[1], [0], [0], [1], [0, 0, 1, 1], [], []>} : vector<18x64xf32>, vector<64x32xf32>, vector<18x32xf32> -> vector<18x32xf32>
    %c0_9 = arith.constant 0 : index
    %c0_10 = arith.constant 0 : index
    %10 = vector.load %arg5[%c0_9, %c0_10] : memref<1x32xf32, #tpu.memory_space<vmem>>, vector<1x32xf32>
    %11 = vector.broadcast %10 : vector<1x32xf32> to vector<18x32xf32>
    %12 = arith.addf %9, %11 : vector<18x32xf32>
    %13 = arith.addf %12, %0 : vector<18x32xf32>
    %c0_11 = arith.constant 0 : index
    %c0_12 = arith.constant 0 : index
    %14 = vector.load %arg6[%c0_11, %c0_12] : memref<1x32xf32, #tpu.memory_space<vmem>>, vector<1x32xf32>
    %c0_13 = arith.constant 0 : index
    %c0_14 = arith.constant 0 : index
    %15 = vector.load %arg7[%c0_13, %c0_14] : memref<1x32xf32, #tpu.memory_space<vmem>>, vector<1x32xf32>
    %cst_15 = arith.constant dense<0.000000e+00> : vector<18xf32>
    %16 = vector.multi_reduction <add>, %13, %cst_15 [1] : vector<18x32xf32> to vector<18xf32>
    %17 = vector.shape_cast %16 : vector<18xf32> to vector<18x1xf32>
    %cst_16 = arith.constant 3.200000e+01 : f32
    %18 = vector.broadcast %cst_16 : f32 to vector<18x1xf32>
    %19 = arith.divf %17, %18 : vector<18x1xf32>
    %20 = vector.broadcast %19 : vector<18x1xf32> to vector<18x32xf32>
    %21 = arith.subf %13, %20 : vector<18x32xf32>
    %22 = arith.mulf %21, %21 : vector<18x32xf32>
    %cst_17 = arith.constant dense<0.000000e+00> : vector<18xf32>
    %23 = vector.multi_reduction <add>, %22, %cst_17 [1] : vector<18x32xf32> to vector<18xf32>
    %24 = vector.shape_cast %23 : vector<18xf32> to vector<18x1xf32>
    %cst_18 = arith.constant 3.200000e+01 : f32
    %25 = vector.broadcast %cst_18 : f32 to vector<18x1xf32>
    %26 = arith.divf %24, %25 : vector<18x1xf32>
    %27 = vector.broadcast %19 : vector<18x1xf32> to vector<18x32xf32>
    %28 = arith.subf %13, %27 : vector<18x32xf32>
    %cst_19 = arith.constant 9.99999974E-6 : f32
    %29 = vector.broadcast %cst_19 : f32 to vector<18x1xf32>
    %30 = arith.addf %26, %29 : vector<18x1xf32>
    %31 = math.rsqrt %30 : vector<18x1xf32>
    %32 = vector.broadcast %31 : vector<18x1xf32> to vector<18x32xf32>
    %33 = arith.mulf %28, %32 : vector<18x32xf32>
    %34 = vector.broadcast %14 : vector<1x32xf32> to vector<18x32xf32>
    %35 = arith.mulf %33, %34 : vector<18x32xf32>
    %36 = vector.broadcast %15 : vector<1x32xf32> to vector<18x32xf32>
    %37 = arith.addf %35, %36 : vector<18x32xf32>
    %c0_20 = arith.constant 0 : index
    %c0_21 = arith.constant 0 : index
    %38 = vector.load %arg8[%c0_20, %c0_21] : memref<18x32xf32, #tpu.memory_space<vmem>>, vector<18x32xf32>
    tpu.vector_store %arg8[%c0_20, %c0_21], %37 {strides = array<i32>} : memref<18x32xf32, #tpu.memory_space<vmem>>, vector<18x32xf32>,
    return
  }
  func.func @transform_0(%arg0: i32) -> (i32, i32) {
    %c0_i32 = arith.constant 0 : i32
    %c0_i32_0 = arith.constant 0 : i32
    return %arg0, %c0_i32 : i32, i32
  }
  func.func @transform_1(%arg0: i32) -> (i32, i32) {
    %c0_i32 = arith.constant 0 : i32
    %c0_i32_0 = arith.constant 0 : i32
    %c0_i32_1 = arith.constant 0 : i32
    return %c0_i32, %c0_i32_0 : i32, i32
  }
  func.func @transform_2(%arg0: i32) -> (i32, i32) {
    %c0_i32 = arith.constant 0 : i32
    %c0_i32_0 = arith.constant 0 : i32
    %c0_i32_1 = arith.constant 0 : i32
    return %c0_i32, %c0_i32_0 : i32, i32
  }
  func.func @transform_3(%arg0: i32) -> (i32, i32) {
    %c0_i32 = arith.constant 0 : i32
    %c0_i32_0 = arith.constant 0 : i32
    %c0_i32_1 = arith.constant 0 : i32
    return %c0_i32, %c0_i32_0 : i32, i32
  }
  func.func @transform_4(%arg0: i32) -> (i32, i32) {
    %c0_i32 = arith.constant 0 : i32
    %c0_i32_0 = arith.constant 0 : i32
    %c0_i32_1 = arith.constant 0 : i32
    return %c0_i32, %c0_i32_0 : i32, i32
  }
  func.func @transform_5(%arg0: i32) -> (i32, i32) {
    %c0_i32 = arith.constant 0 : i32
    %c0_i32_0 = arith.constant 0 : i32
    %c0_i32_1 = arith.constant 0 : i32
    return %c0_i32, %c0_i32_0 : i32, i32
  }
  func.func @transform_6(%arg0: i32) -> (i32, i32) {
    %c0_i32 = arith.constant 0 : i32
    %c0_i32_0 = arith.constant 0 : i32
    %c0_i32_1 = arith.constant 0 : i32
    return %c0_i32, %c0_i32_0 : i32, i32
  }
  func.func @transform_7(%arg0: i32) -> (i32, i32) {
    %c0_i32 = arith.constant 0 : i32
    %c0_i32_0 = arith.constant 0 : i32
    return %arg0, %c0_i32 : i32, i32
  }
}

</mosaic_0001>

<llo_original>
// kernel: transformer_forward.10
$region0: #{transformer_forward.10}
  #allocation0 [shape = 'u32[]', space=smem, size = 0x4, offset = 0x4, fixed_abs, tag = 'smem constant byte address 0x4 - core index']
  #allocation1 [shape = 'u32[144,128]{1,0:T(1,128)}', space=vmem, size = 0x12000, scoped, tag = 'internal scratch']
  %s0 = inlined_call_operand.vmem [shape: f32[18,32], index: 0, kind: input, shape index: {}]
  %s1 = inlined_call_operand.vmem [shape: f32[32,96], index: 1, kind: input, shape index: {}]
  %s2 = inlined_call_operand.vmem [shape: f32[1,96], index: 2, kind: input, shape index: {}]
  %s3 = inlined_call_operand.vmem [shape: f32[18,32], index: 3, kind: output, shape index: {0}]
  %s4 = inlined_call_operand.vmem [shape: f32[18,32], index: 4, kind: output, shape index: {1}]
  %s5 = inlined_call_operand.vmem [shape: f32[18,32], index: 5, kind: output, shape index: {2}]
  %6 = xla_tuple %s3, %s4, %s5
  %s7 = sld [smem:[#allocation0]]
  $region38: #{transformer_forward.10} parent=0
    _
  %s9 = ssub.s32 1, %s7
  %s10 = scalar_select 0, %s9, %s7
  // Predicated region
  $region2: #{transformer_forward.10} parent=0 // pred_check
    _
  $region3: #{transformer_forward.10} parent=0 // pred_check_branch
    %12 = sbr.rel (0) target = $region5
  $region4: #{transformer_forward.10} parent=0 // pred_region
    _
  $region5: #{transformer_forward.10} parent=0 // pred_fallthru
    _
  // Predicated region
  $region6: #{transformer_forward.10} parent=0 // pred_check
    _
  $region7: #{transformer_forward.10} parent=0 // pred_check_branch
    %14 = sbr.rel (0) target = $region9
  $region8: #{transformer_forward.10} parent=0 // pred_region
    _
  $region9: #{transformer_forward.10} parent=0 // pred_fallthru
    _
  // Predicated region
  $region10: #{transformer_forward.10} parent=0 // pred_check
    _
  $region11: #{transformer_forward.10} parent=0 // pred_check_branch
    %16 = sbr.rel (0) target = $region13
  $region12: #{transformer_forward.10} parent=0 // pred_region
    _
  $region13: #{transformer_forward.10} parent=0 // pred_fallthru
    _
  %v17 = vld [vmem:[%s0] sm:$0xff]
  %v18 = vld [vmem:[%s0 + $0x8] sm:$0xff]
  %v19 = vld [vmem:[%s0 + $0x10] sm:$0x3]
  %v20 = vld [vmem:[%s1] sm:$0xff]
  %v21 = vld [vmem:[%s1 + $0x8] sm:$0xff]
  %v22 = vld [vmem:[%s1 + $0x10] sm:$0xff]
  %v23 = vld [vmem:[%s1 + $0x18] sm:$0xff]
  %v24 = vld [vmem:[%s2] sm:$0x1]
  %v26 = vlaneseq
  %v27 = vshrl.u32 %v26, 7
  %v28 = vsub.s32 0, %v27
  %v29 = vrot.slane %v24, %v28
  %vm31 = vcmask 261120
  %v33 = vsel %vm31, %v17, 0
  %v36 = vsel %vm31, %v18, 0
  %v39 = vsel %vm31, %v19, 0
  %41 = vmatprep.subr.mxu0 0.0
  %42 = vmatpush1.msra.mxu0 %v20
  %43 = vmatprep.subr.mxu0 0.0
  %44 = vmatpush1.msra.mxu0 %v21
  %45 = vmatprep.subr.mxu0 0.0
  %46 = vmatpush1.msra.mxu0 %v22
  %47 = vmatprep.subr.mxu0 0.0
  %48 = vmatpush1.msra.mxu0 %v23
  %49 = vmatprep.subr.mxu0 0.0
  %50 = vmatpush1.msra.mxu0 0.0
  %51 = vmatprep.subr.mxu0 0.0
  %52 = vmatpush1.msra.mxu0 0.0
  %53 = vmatprep.subr.mxu0 0.0
  %54 = vmatpush1.msra.mxu0 0.0
  %55 = vmatprep.subr.mxu0 0.0
  %56 = vmatpush1.msra.mxu0 0.0
  %57 = vmatprep.subr.mxu0 0.0
  %58 = vmatpush1.msra.mxu0 0.0
  %59 = vmatprep.subr.mxu0 0.0
  %60 = vmatpush1.msra.mxu0 0.0
  %61 = vmatprep.subr.mxu0 0.0
  %62 = vmatpush1.msra.mxu0 0.0
  %63 = vmatprep.subr.mxu0 0.0
  %64 = vmatpush1.msra.mxu0 0.0
  %65 = vmatprep.subr.mxu0 0.0
  %66 = vmatpush1.msra.mxu0 0.0
  %67 = vmatprep.subr.mxu0 0.0
  %68 = vmatpush1.msra.mxu0 0.0
  %69 = vmatprep.subr.mxu0 0.0
  %70 = vmatpush1.msra.mxu0 0.0
  %71 = vmatprep.subr.mxu0 0.0
  %72 = vmatpush1.msra.mxu0 0.0
  %73 = vmatprep.subr.mxu0 0.0
  %74 = vmatpush1.msra.mxu0 0.0
  %75 = vmatprep.subr.mxu0 0.0
  %76 = vmatpush1.msra.mxu0 0.0
  %77 = vmatprep.subr.mxu0 0.0
  %78 = vmatpush1.msra.mxu0 0.0
  %79 = vmatprep.subr.mxu0 0.0
  %80 = vmatpush1.msra.mxu0 0.0
  %81 = vmatprep.subr.mxu0 0.0
  %82 = vmatpush1.msra.mxu0 0.0
  %83 = vmatprep.subr.mxu0 0.0
  %84 = vmatpush1.msra.mxu0 0.0
  %85 = vmatprep.subr.mxu0 0.0
  %86 = vmatpush1.msra.mxu0 0.0
  %87 = vmatprep.subr.mxu0 0.0
  %88 = vmatpush1.msra.mxu0 0.0
  %89 = vmatprep.subr.mxu0 0.0
  %90 = vmatpush1.msra.mxu0 0.0
  %91 = vmatprep.subr.mxu0 0.0
  %92 = vmatpush1.msra.mxu0 0.0
  %93 = vmatprep.subr.mxu0 0.0
  %94 = vmatpush1.msra.mxu0 0.0
  %95 = vmatprep.subr.mxu0 0.0
  %96 = vmatpush1.msra.mxu0 0.0
  %97 = vmatprep.subr.mxu0 0.0
  %98 = vmatpush1.msra.mxu0 0.0
  %99 = vmatprep.subr.mxu0 0.0
  %100 = vmatpush1.msra.mxu0 0.0
  %101 = vmatprep.subr.mxu0 0.0
  %102 = vmatpush1.msra.mxu0 0.0
  %103 = vmatprep.subr.mxu0 0.0
  %104 = vmatpush1.msra.mxu0 0.0
  %105 = vmatprep.mubr.f32.mxu0 0.0
  %106 = vmatmul.mubr.f32.gmra.mrb[0].mxu0 %v33
  %v107 = vpop.f32.mrb[0].mxu0
  %v108 = vadd.f32 %v29, %v107
  %v109 = vpop.f32.mrb[0].mxu0
  %110 = vmatprep.mubr.f32.mxu0 0.0
  %111 = vmatmul.mubr.f32.gmra.mrb[0].mxu0 %v36
  %v112 = vpop.f32.mrb[0].mxu0
  %v113 = vadd.f32 %v29, %v112
  %v114 = vpop.f32.mrb[0].mxu0
  %115 = vmatprep.mubr.f32.mxu0 0.0
  %116 = vmatmul.mubr.f32.gmra.mrb[0].mxu0 %v39
  %v117 = vpop.f32.mrb[0].mxu0
  %v118 = vadd.f32 %v29, %v117
  %v119 = vpop.f32.mrb[0].mxu0
  %120 = vdwg.mxu0
  %121 = vst.msk [vmem:[%s3] sm:$0xff] %vm31, %v108
  %122 = vst.msk [vmem:[%s3 + $0x8] sm:$0xff] %vm31, %v113
  %vm123 = vcmask 254976
  %124 = vst.msk [vmem:[%s3 + $0x10] sm:$0x3] %vm123, %v118
  %128 = vrot.lane.b32.xlu0 %v108, 96
  %v129 = vpop.permute.xlu0 %128
  %130 = vrot.lane.b32.xlu0 %v113, 96
  %v131 = vpop.permute.xlu0 %130
  %132 = vrot.lane.b32.xlu0 %v118, 96
  %v133 = vpop.permute.xlu0 %132
  %137 = vst.msk [vmem:[%s4] sm:$0xff] %vm31, %v129
  %138 = vst.msk [vmem:[%s4 + $0x8] sm:$0xff] %vm31, %v131
  %139 = vst.msk [vmem:[%s4 + $0x10] sm:$0x3] %vm123, %v133
  %140 = vrot.lane.b32.xlu0 %v108, 64
  %v141 = vpop.permute.xlu0 %140
  %142 = vrot.lane.b32.xlu0 %v113, 64
  %v143 = vpop.permute.xlu0 %142
  %144 = vrot.lane.b32.xlu0 %v118, 64
  %v145 = vpop.permute.xlu0 %144
  %149 = vst.msk [vmem:[%s5] sm:$0xff] %vm31, %v141
  %150 = vst.msk [vmem:[%s5 + $0x8] sm:$0xff] %vm31, %v143
  %151 = vst.msk [vmem:[%s5 + $0x10] sm:$0x3] %vm123, %v145
  // Predicated region
  $region14: #{transformer_forward.10} parent=0 // pred_check
    _
  $region15: #{transformer_forward.10} parent=0 // pred_check_branch
    %153 = sbr.rel (0) target = $region17
  $region16: #{transformer_forward.10} parent=0 // pred_region
    _
  $region17: #{transformer_forward.10} parent=0 // pred_fallthru
    _
  // Predicated region
  $region18: #{transformer_forward.10} parent=0 // pred_check
    _
  $region19: #{transformer_forward.10} parent=0 // pred_check_branch
    %155 = sbr.rel (0) target = $region21
  $region20: #{transformer_forward.10} parent=0 // pred_region
    _
  $region21: #{transformer_forward.10} parent=0 // pred_fallthru
    _
  // Predicated region
  $region22: #{transformer_forward.10} parent=0 // pred_check
    _
  $region23: #{transformer_forward.10} parent=0 // pred_check_branch
    %157 = sbr.rel (0) target = $region25
  $region24: #{transformer_forward.10} parent=0 // pred_region
    _
  $region25: #{transformer_forward.10} parent=0 // pred_fallthru
    _
  // Predicated region
  $region26: #{transformer_forward.10} parent=0 // pred_check
    _
  $region27: #{transformer_forward.10} parent=0 // pred_check_branch
    %159 = sbr.rel (0) target = $region29
  $region28: #{transformer_forward.10} parent=0 // pred_region
    _
  $region29: #{transformer_forward.10} parent=0 // pred_fallthru
    _
  // Predicated region
  $region30: #{transformer_forward.10} parent=0 // pred_check
    _
  $region31: #{transformer_forward.10} parent=0 // pred_check_branch
    %161 = sbr.rel (0) target = $region33
  $region32: #{transformer_forward.10} parent=0 // pred_region
    _
  $region33: #{transformer_forward.10} parent=0 // pred_fallthru
    _
  // Predicated region
  $region34: #{transformer_forward.10} parent=0 // pred_check
    _
  $region35: #{transformer_forward.10} parent=0 // pred_check_branch
    %163 = sbr.rel (0) target = $region37
  $region36: #{transformer_forward.10} parent=0 // pred_region
    _
  $region37: #{transformer_forward.10} parent=0 // pred_fallthru
    _

// kernel: transformer_forward.9
$region0: #{transformer_forward.9}
  #allocation0 [shape = 'u32[]', space=smem, size = 0x4, offset = 0x4, fixed_abs, tag = 'smem constant byte address 0x4 - core index']
  #allocation1 [shape = 'u32[144,128]{1,0:T(1,128)}', space=vmem, size = 0x12000, scoped, tag = 'internal scratch']
  %s0 = inlined_call_operand.vmem [shape: f32[18,5], index: 0, kind: input, shape index: {}]
  %s1 = inlined_call_operand.vmem [shape: f32[5,32], index: 1, kind: input, shape index: {}]
  %s2 = inlined_call_operand.vmem [shape: f32[1,32], index: 2, kind: input, shape index: {}]
  %s3 = inlined_call_operand.vmem [shape: f32[18,32], index: 3, kind: output, shape index: {}]
  %s4 = sld [smem:[#allocation0]]
  $region22: #{transformer_forward.9} parent=0
    _
  %s6 = ssub.s32 1, %s4
  %s7 = scalar_select 0, %s6, %s4
  // Predicated region
  $region2: #{transformer_forward.9} parent=0 // pred_check
    _
  $region3: #{transformer_forward.9} parent=0 // pred_check_branch
    %9 = sbr.rel (0) target = $region5
  $region4: #{transformer_forward.9} parent=0 // pred_region
    _
  $region5: #{transformer_forward.9} parent=0 // pred_fallthru
    _
  // Predicated region
  $region6: #{transformer_forward.9} parent=0 // pred_check
    _
  $region7: #{transformer_forward.9} parent=0 // pred_check_branch
    %11 = sbr.rel (0) target = $region9
  $region8: #{transformer_forward.9} parent=0 // pred_region
    _
  $region9: #{transformer_forward.9} parent=0 // pred_fallthru
    _
  // Predicated region
  $region10: #{transformer_forward.9} parent=0 // pred_check
    _
  $region11: #{transformer_forward.9} parent=0 // pred_check_branch
    %13 = sbr.rel (0) target = $region13
  $region12: #{transformer_forward.9} parent=0 // pred_region
    _
  $region13: #{transformer_forward.9} parent=0 // pred_fallthru
    _
  %v14 = vld [vmem:[%s0] sm:$0xff]
  %v15 = vld [vmem:[%s0 + $0x8] sm:$0xff]
  %v16 = vld [vmem:[%s0 + $0x10] sm:$0x3]
  %v17 = vld [vmem:[%s1] sm:$0x1f]
  %v18 = vld [vmem:[%s2] sm:$0x1]
  %v20 = vlaneseq
  %v21 = vshrl.u32 %v20, 7
  %v22 = vsub.s32 0, %v21
  %v23 = vrot.slane %v18, %v22
  %vm25 = vcmask 39936
  %v27 = vsel %vm25, %v14, 0
  %v30 = vsel %vm25, %v15, 0
  %v33 = vsel %vm25, %v16, 0
  %vm35 = vcmask 1044480
  %v37 = vsel %vm35, %v17, 0
  %39 = vmatprep.subr.mxu0 0.0
  %40 = vmatpush1.msra.mxu0 %v37
  %41 = vmatprep.subr.mxu0 0.0
  %42 = vmatpush1.msra.mxu0 0.0
  %43 = vmatprep.subr.mxu0 0.0
  %44 = vmatpush1.msra.mxu0 0.0
  %45 = vmatprep.subr.mxu0 0.0
  %46 = vmatpush1.msra.mxu0 0.0
  %47 = vmatprep.subr.mxu0 0.0
  %48 = vmatpush1.msra.mxu0 0.0
  %49 = vmatprep.subr.mxu0 0.0
  %50 = vmatpush1.msra.mxu0 0.0
  %51 = vmatprep.subr.mxu0 0.0
  %52 = vmatpush1.msra.mxu0 0.0
  %53 = vmatprep.subr.mxu0 0.0
  %54 = vmatpush1.msra.mxu0 0.0
  %55 = vmatprep.subr.mxu0 0.0
  %56 = vmatpush1.msra.mxu0 0.0
  %57 = vmatprep.subr.mxu0 0.0
  %58 = vmatpush1.msra.mxu0 0.0
  %59 = vmatprep.subr.mxu0 0.0
  %60 = vmatpush1.msra.mxu0 0.0
  %61 = vmatprep.subr.mxu0 0.0
  %62 = vmatpush1.msra.mxu0 0.0
  %63 = vmatprep.subr.mxu0 0.0
  %64 = vmatpush1.msra.mxu0 0.0
  %65 = vmatprep.subr.mxu0 0.0
  %66 = vmatpush1.msra.mxu0 0.0
  %67 = vmatprep.subr.mxu0 0.0
  %68 = vmatpush1.msra.mxu0 0.0
  %69 = vmatprep.subr.mxu0 0.0
  %70 = vmatpush1.msra.mxu0 0.0
  %71 = vmatprep.subr.mxu0 0.0
  %72 = vmatpush1.msra.mxu0 0.0
  %73 = vmatprep.subr.mxu0 0.0
  %74 = vmatpush1.msra.mxu0 0.0
  %75 = vmatprep.subr.mxu0 0.0
  %76 = vmatpush1.msra.mxu0 0.0
  %77 = vmatprep.subr.mxu0 0.0
  %78 = vmatpush1.msra.mxu0 0.0
  %79 = vmatprep.subr.mxu0 0.0
  %80 = vmatpush1.msra.mxu0 0.0
  %81 = vmatprep.subr.mxu0 0.0
  %82 = vmatpush1.msra.mxu0 0.0
  %83 = vmatprep.subr.mxu0 0.0
  %84 = vmatpush1.msra.mxu0 0.0
  %85 = vmatprep.subr.mxu0 0.0
  %86 = vmatpush1.msra.mxu0 0.0
  %87 = vmatprep.subr.mxu0 0.0
  %88 = vmatpush1.msra.mxu0 0.0
  %89 = vmatprep.subr.mxu0 0.0
  %90 = vmatpush1.msra.mxu0 0.0
  %91 = vmatprep.subr.mxu0 0.0
  %92 = vmatpush1.msra.mxu0 0.0
  %93 = vmatprep.subr.mxu0 0.0
  %94 = vmatpush1.msra.mxu0 0.0
  %95 = vmatprep.subr.mxu0 0.0
  %96 = vmatpush1.msra.mxu0 0.0
  %97 = vmatprep.subr.mxu0 0.0
  %98 = vmatpush1.msra.mxu0 0.0
  %99 = vmatprep.subr.mxu0 0.0
  %100 = vmatpush1.msra.mxu0 0.0
  %101 = vmatprep.subr.mxu0 0.0
  %102 = vmatpush1.msra.mxu0 0.0
  %103 = vmatprep.mubr.f32.mxu0 0.0
  %104 = vmatmul.mubr.f32.gmra.mrb[0].mxu0 %v27
  %v105 = vpop.f32.mrb[0].mxu0
  %v106 = vadd.f32 %v23, %v105
  %v107 = vpop.f32.mrb[0].mxu0
  %108 = vmatprep.mubr.f32.mxu0 0.0
  %109 = vmatmul.mubr.f32.gmra.mrb[0].mxu0 %v30
  %v110 = vpop.f32.mrb[0].mxu0
  %v111 = vadd.f32 %v23, %v110
  %v112 = vpop.f32.mrb[0].mxu0
  %113 = vmatprep.mubr.f32.mxu0 0.0
  %114 = vmatmul.mubr.f32.gmra.mrb[0].mxu0 %v33
  %v115 = vpop.f32.mrb[0].mxu0
  %v116 = vadd.f32 %v23, %v115
  %v117 = vpop.f32.mrb[0].mxu0
  %118 = vdwg.mxu0
  %vm119 = vcmask 261120
  %120 = vst.msk [vmem:[%s3] sm:$0xff] %vm119, %v106
  %121 = vst.msk [vmem:[%s3 + $0x8] sm:$0xff] %vm119, %v111
  %vm122 = vcmask 254976
  %123 = vst.msk [vmem:[%s3 + $0x10] sm:$0x3] %vm122, %v116
  // Predicated region
  $region14: #{transformer_forward.9} parent=0 // pred_check
    _
  $region15: #{transformer_forward.9} parent=0 // pred_check_branch
    %125 = sbr.rel (0) target = $region17
  $region16: #{transformer_forward.9} parent=0 // pred_region
    _
  $region17: #{transformer_forward.9} parent=0 // pred_fallthru
    _
  // Predicated region
  $region18: #{transformer_forward.9} parent=0 // pred_check
    _
  $region19: #{transformer_forward.9} parent=0 // pred_check_branch
    %127 = sbr.rel (0) target = $region21
  $region20: #{transformer_forward.9} parent=0 // pred_region
    _
  $region21: #{transformer_forward.9} parent=0 // pred_fallthru
    _

// kernel: transformer_forward.12
$region0: #{transformer_forward.12}
  #allocation0 [shape = 'u32[]', space=smem, size = 0x4, offset = 0x4, fixed_abs, tag = 'smem constant byte address 0x4 - core index']
  #allocation1 [shape = 'u32[144,128]{1,0:T(1,128)}', space=vmem, size = 0x12000, scoped, tag = 'internal scratch']
  %s0 = inlined_call_operand.vmem [shape: f32[18,32], index: 0, kind: input, shape index: {}]
  %s1 = inlined_call_operand.vmem [shape: f32[32,32], index: 1, kind: input, shape index: {}]
  %s2 = inlined_call_operand.vmem [shape: f32[1,32], index: 2, kind: input, shape index: {}]
  %s3 = inlined_call_operand.vmem [shape: f32[18,32], index: 3, kind: input, shape index: {}]
  %s4 = inlined_call_operand.vmem [shape: f32[1,32], index: 4, kind: input, shape index: {}]
  %s5 = inlined_call_operand.vmem [shape: f32[1,32], index: 5, kind: input, shape index: {}]
  %s6 = inlined_call_operand.vmem [shape: f32[18,32], index: 6, kind: output, shape index: {}]
  %s7 = sld [smem:[#allocation0]]
  $region34: #{transformer_forward.12} parent=0
    _
  %s9 = ssub.s32 1, %s7
  %s10 = scalar_select 0, %s9, %s7
  // Predicated region
  $region2: #{transformer_forward.12} parent=0 // pred_check
    _
  $region3: #{transformer_forward.12} parent=0 // pred_check_branch
    %12 = sbr.rel (0) target = $region5
  $region4: #{transformer_forward.12} parent=0 // pred_region
    _
  $region5: #{transformer_forward.12} parent=0 // pred_fallthru
    _
  // Predicated region
  $region6: #{transformer_forward.12} parent=0 // pred_check
    _
  $region7: #{transformer_forward.12} parent=0 // pred_check_branch
    %14 = sbr.rel (0) target = $region9
  $region8: #{transformer_forward.12} parent=0 // pred_region
    _
  $region9: #{transformer_forward.12} parent=0 // pred_fallthru
    _
  // Predicated region
  $region10: #{transformer_forward.12} parent=0 // pred_check
    _
  $region11: #{transformer_forward.12} parent=0 // pred_check_branch
    %16 = sbr.rel (0) target = $region13
  $region12: #{transformer_forward.12} parent=0 // pred_region
    _
  $region13: #{transformer_forward.12} parent=0 // pred_fallthru
    _
  // Predicated region
  $region14: #{transformer_forward.12} parent=0 // pred_check
    _
  $region15: #{transformer_forward.12} parent=0 // pred_check_branch
    %18 = sbr.rel (0) target = $region17
  $region16: #{transformer_forward.12} parent=0 // pred_region
    _
  $region17: #{transformer_forward.12} parent=0 // pred_fallthru
    _
  // Predicated region
  $region18: #{transformer_forward.12} parent=0 // pred_check
    _
  $region19: #{transformer_forward.12} parent=0 // pred_check_branch
    %20 = sbr.rel (0) target = $region21
  $region20: #{transformer_forward.12} parent=0 // pred_region
    _
  $region21: #{transformer_forward.12} parent=0 // pred_fallthru
    _
  // Predicated region
  $region22: #{transformer_forward.12} parent=0 // pred_check
    _
  $region23: #{transformer_forward.12} parent=0 // pred_check_branch
    %22 = sbr.rel (0) target = $region25
  $region24: #{transformer_forward.12} parent=0 // pred_region
    _
  $region25: #{transformer_forward.12} parent=0 // pred_fallthru
    _
  %v23 = vld [vmem:[%s0] sm:$0xff]
  %v24 = vld [vmem:[%s0 + $0x8] sm:$0xff]
  %v25 = vld [vmem:[%s0 + $0x10] sm:$0x3]
  %v26 = vld [vmem:[%s1] sm:$0xff]
  %v27 = vld [vmem:[%s1 + $0x8] sm:$0xff]
  %v28 = vld [vmem:[%s1 + $0x10] sm:$0xff]
  %v29 = vld [vmem:[%s1 + $0x18] sm:$0xff]
  %v30 = vld [vmem:[%s2] sm:$0x1]
  %v32 = vlaneseq
  %v33 = vshrl.u32 %v32, 7
  %v34 = vsub.s32 0, %v33
  %v35 = vrot.slane %v30, %v34
  %vm37 = vcmask 261120
  %v39 = vsel %vm37, %v23, 0
  %v42 = vsel %vm37, %v24, 0
  %v45 = vsel %vm37, %v25, 0
  %47 = vmatprep.subr.mxu0 0.0
  %48 = vmatpush1.msra.mxu0 %v26
  %49 = vmatprep.subr.mxu0 0.0
  %50 = vmatpush1.msra.mxu0 %v27
  %51 = vmatprep.subr.mxu0 0.0
  %52 = vmatpush1.msra.mxu0 %v28
  %53 = vmatprep.subr.mxu0 0.0
  %54 = vmatpush1.msra.mxu0 %v29
  %55 = vmatprep.subr.mxu0 0.0
  %56 = vmatpush1.msra.mxu0 0.0
  %57 = vmatprep.subr.mxu0 0.0
  %58 = vmatpush1.msra.mxu0 0.0
  %59 = vmatprep.subr.mxu0 0.0
  %60 = vmatpush1.msra.mxu0 0.0
  %61 = vmatprep.subr.mxu0 0.0
  %62 = vmatpush1.msra.mxu0 0.0
  %63 = vmatprep.subr.mxu0 0.0
  %64 = vmatpush1.msra.mxu0 0.0
  %65 = vmatprep.subr.mxu0 0.0
  %66 = vmatpush1.msra.mxu0 0.0
  %67 = vmatprep.subr.mxu0 0.0
  %68 = vmatpush1.msra.mxu0 0.0
  %69 = vmatprep.subr.mxu0 0.0
  %70 = vmatpush1.msra.mxu0 0.0
  %71 = vmatprep.subr.mxu0 0.0
  %72 = vmatpush1.msra.mxu0 0.0
  %73 = vmatprep.subr.mxu0 0.0
  %74 = vmatpush1.msra.mxu0 0.0
  %75 = vmatprep.subr.mxu0 0.0
  %76 = vmatpush1.msra.mxu0 0.0
  %77 = vmatprep.subr.mxu0 0.0
  %78 = vmatpush1.msra.mxu0 0.0
  %79 = vmatprep.subr.mxu0 0.0
  %80 = vmatpush1.msra.mxu0 0.0
  %81 = vmatprep.subr.mxu0 0.0
  %82 = vmatpush1.msra.mxu0 0.0
  %83 = vmatprep.subr.mxu0 0.0
  %84 = vmatpush1.msra.mxu0 0.0
  %85 = vmatprep.subr.mxu0 0.0
  %86 = vmatpush1.msra.mxu0 0.0
  %87 = vmatprep.subr.mxu0 0.0
  %88 = vmatpush1.msra.mxu0 0.0
  %89 = vmatprep.subr.mxu0 0.0
  %90 = vmatpush1.msra.mxu0 0.0
  %91 = vmatprep.subr.mxu0 0.0
  %92 = vmatpush1.msra.mxu0 0.0
  %93 = vmatprep.subr.mxu0 0.0
  %94 = vmatpush1.msra.mxu0 0.0
  %95 = vmatprep.subr.mxu0 0.0
  %96 = vmatpush1.msra.mxu0 0.0
  %97 = vmatprep.subr.mxu0 0.0
  %98 = vmatpush1.msra.mxu0 0.0
  %99 = vmatprep.subr.mxu0 0.0
  %100 = vmatpush1.msra.mxu0 0.0
  %101 = vmatprep.subr.mxu0 0.0
  %102 = vmatpush1.msra.mxu0 0.0
  %103 = vmatprep.subr.mxu0 0.0
  %104 = vmatpush1.msra.mxu0 0.0
  %105 = vmatprep.subr.mxu0 0.0
  %106 = vmatpush1.msra.mxu0 0.0
  %107 = vmatprep.subr.mxu0 0.0
  %108 = vmatpush1.msra.mxu0 0.0
  %109 = vmatprep.subr.mxu0 0.0
  %110 = vmatpush1.msra.mxu0 0.0
  %111 = vmatprep.mubr.f32.mxu0 0.0
  %112 = vmatmul.mubr.f32.gmra.mrb[0].mxu0 %v39
  %v113 = vpop.f32.mrb[0].mxu0
  %v114 = vadd.f32 %v35, %v113
  %v115 = vpop.f32.mrb[0].mxu0
  %116 = vmatprep.mubr.f32.mxu0 0.0
  %117 = vmatmul.mubr.f32.gmra.mrb[0].mxu0 %v42
  %v118 = vpop.f32.mrb[0].mxu0
  %v119 = vadd.f32 %v35, %v118
  %v120 = vpop.f32.mrb[0].mxu0
  %121 = vmatprep.mubr.f32.mxu0 0.0
  %122 = vmatmul.mubr.f32.gmra.mrb[0].mxu0 %v45
  %v123 = vpop.f32.mrb[0].mxu0
  %v124 = vadd.f32 %v35, %v123
  %v125 = vpop.f32.mrb[0].mxu0
  %126 = vdwg.mxu0
  %v127 = vld [vmem:[%s3] sm:$0xff]
  %v128 = vld [vmem:[%s3 + $0x8] sm:$0xff]
  %v129 = vld [vmem:[%s3 + $0x10] sm:$0x3]
  %v130 = vadd.f32 %v114, %v127
  %v131 = vadd.f32 %v119, %v128
  %v132 = vadd.f32 %v124, %v129
  %v133 = vld [vmem:[%s4] sm:$0x1]
  %v134 = vld [vmem:[%s5] sm:$0x1]
  %v135 = vsel %vm37, %v130, 0.0
  %136 = vadd.xlane.f32.xlu0 %v135
  %v137 = vpop.xlane.xlu0 %136
  %v138 = vsel %vm37, %v131, 0.0
  %139 = vadd.xlane.f32.xlu0 %v138
  %v140 = vpop.xlane.xlu0 %139
  %vm141 = vcmask 254976
  %v142 = vsel %vm141, %v132, 0.0
  %143 = vadd.xlane.f32.xlu0 %v142
  %v144 = vpop.xlane.xlu0 %143
  %v145 = vrcp.pop 32.0
  %v146 = vmul.f32 %v137, %v145
  %v147 = vmul.f32 %v140, %v145
  %v148 = vmul.f32 %v144, %v145
  %v149 = vsub.f32 %v130, %v146
  %v150 = vsub.f32 %v131, %v147
  %v151 = vsub.f32 %v132, %v148
  %v152 = vmul.f32 %v149, %v149
  %v153 = vmul.f32 %v150, %v150
  %v154 = vmul.f32 %v151, %v151
  %v155 = vsel %vm37, %v152, 0.0
  %156 = vadd.xlane.f32.xlu0 %v155
  %v157 = vpop.xlane.xlu0 %156
  %v158 = vsel %vm37, %v153, 0.0
  %159 = vadd.xlane.f32.xlu0 %v158
  %v160 = vpop.xlane.xlu0 %159
  %v161 = vsel %vm141, %v154, 0.0
  %162 = vadd.xlane.f32.xlu0 %v161
  %v163 = vpop.xlane.xlu0 %162
  %v164 = vmul.f32 %v157, %v145
  %v165 = vmul.f32 %v160, %v145
  %v166 = vmul.f32 %v163, %v145
  %v167 = vadd.f32 %v164, 1e-05
  %v168 = vadd.f32 %v165, 1e-05
  %v169 = vadd.f32 %v166, 1e-05
  %v170 = vrsqrt.pop %v167
  %v171 = vrsqrt.pop %v168
  %v172 = vrsqrt.pop %v169
  %v173 = vmul.f32 %v149, %v170
  %v174 = vmul.f32 %v150, %v171
  %v175 = vmul.f32 %v151, %v172
  %v177 = vlaneseq
  %v178 = vshrl.u32 %v177, 7
  %v179 = vsub.s32 0, %v178
  %v180 = vrot.slane %v133, %v179
  %v182 = vmul.f32 %v173, %v180
  %v183 = vmul.f32 %v174, %v180
  %v184 = vmul.f32 %v175, %v180
  %v186 = vlaneseq
  %v187 = vshrl.u32 %v186, 7
  %v188 = vsub.s32 0, %v187
  %v189 = vrot.slane %v134, %v188
  %v191 = vadd.f32 %v182, %v189
  %v192 = vadd.f32 %v183, %v189
  %v193 = vadd.f32 %v184, %v189
  %194 = vst.msk [vmem:[%s6] sm:$0xff] %vm37, %v191
  %195 = vst.msk [vmem:[%s6 + $0x8] sm:$0xff] %vm37, %v192
  %196 = vst.msk [vmem:[%s6 + $0x10] sm:$0x3] %vm141, %v193
  // Predicated region
  $region26: #{transformer_forward.12} parent=0 // pred_check
    _
  $region27: #{transformer_forward.12} parent=0 // pred_check_branch
    %198 = sbr.rel (0) target = $region29
  $region28: #{transformer_forward.12} parent=0 // pred_region
    _
  $region29: #{transformer_forward.12} parent=0 // pred_fallthru
    _
  // Predicated region
  $region30: #{transformer_forward.12} parent=0 // pred_check
    _
  $region31: #{transformer_forward.12} parent=0 // pred_check_branch
    %200 = sbr.rel (0) target = $region33
  $region32: #{transformer_forward.12} parent=0 // pred_region
    _
  $region33: #{transformer_forward.12} parent=0 // pred_fallthru
    _

// kernel: transformer_forward.11
$region0: #{transformer_forward.11}
  #allocation0 [shape = 'u32[]', space=smem, size = 0x4, offset = 0x4, fixed_abs, tag = 'smem constant byte address 0x4 - core index']
  #allocation1 [shape = 'u32[144,128]{1,0:T(1,128)}', space=vmem, size = 0x12000, scoped, tag = 'internal scratch']
  %s0 = inlined_call_operand.vmem [shape: f32[2,9,32], index: 0, kind: input, shape index: {}]
  %s1 = inlined_call_operand.vmem [shape: f32[2,9,32], index: 1, kind: input, shape index: {}]
  %s2 = inlined_call_operand.vmem [shape: f32[2,9,32], index: 2, kind: input, shape index: {}]
  %s3 = inlined_call_operand.vmem [shape: f32[2,9,32], index: 3, kind: output, shape index: {}]
  %s4 = sld [smem:[#allocation0]]
  $region45: #{transformer_forward.11} parent=0
    _
  %s6 = ssub.s32 1, %s4
  %s7 = scalar_select 0, %s6, %s4
  loop: start=0, step=1, limit=4
  $region2: #{transformer_forward.11} parent=0 // loop_pre_header
    _
  $region3: #{transformer_forward.11} parent=0 // loop_header
    %s9 = sphi 0, %s13
    %p10 = scmp.ge.s32.totalorder %s9, 4
    %s19 = sphi 0, %s21
    %s22 = sphi 0, %s19
    %s23 = sphi 0, %s22
    %s39 = sphi 0, %s23
    %s45 = sphi 0, %s47
    %s48 = sphi 0, %s45
    %s49 = sphi 0, %s48
    %s65 = sphi 0, %s49
    %s71 = sphi 0, %s73
    %s74 = sphi 0, %s71
    %s75 = sphi 0, %s74
    %s91 = sphi 0, %s75
    %s97 = sphi 0, %s99
    %s100 = sphi 0, %s97
    %s101 = sphi 0, %s100
    %s117 = sphi 0, %s101
  $region4: #{transformer_forward.11} parent=0 // loop_header_branch
    %12 = sbr.rel (%p10) target = $region8
  $region5: #{transformer_forward.11} parent=0 // loop_body
    %s14 = ssub.s32 %s9, 1
    %s15 = ssub.s32 %s9, 2
    %s16 = sadd.s32 %s9, 1
    %s17 = ssub.s32 %s9, %s16
    %p18 = scmp.eq.s32.totalorder %s17, 0
    %s20 = sadd.s32 %s19, 1
    %s21 = scalar_select %p18, %s19, %s20
    %p24 = pneg %p18
    %p25 = scmp.eq.s32.totalorder %s9, 1
    %p26 = por %p24, %p25
    %p27 = scmp.ne.s32.totalorder %s19, %s22
    %p28 = scmp.eq.s32.totalorder %s9, 0
    %p29 = por %p27, %p28
    %p30 = scmp.ne.s32.totalorder %s19, %s22
    %p31 = scmp.eq.s32.totalorder %s14, 1
    %p32 = por %p30, %p31
    %p33 = scmp.ne.s32.totalorder %s22, %s23
    %p34 = scmp.eq.s32.totalorder %s14, 0
    %p35 = por %p33, %p34
    %p36 = scmp.ne.s32.totalorder %s22, %s23
    %p37 = scmp.eq.s32.totalorder %s15, 1
    %p38 = por %p36, %p37
    %p40 = scmp.ne.s32.totalorder %s23, %s39
    %p41 = scmp.eq.s32.totalorder %s15, 0
    %p42 = por %p40, %p41
    %s43 = ssub.s32 %s9, %s16
    %p44 = scmp.eq.s32.totalorder %s43, 0
    %s46 = sadd.s32 %s45, 1
    %s47 = scalar_select %p44, %s45, %s46
    %p50 = pneg %p44
    %p51 = scmp.eq.s32.totalorder %s9, 1
    %p52 = por %p50, %p51
    %p53 = scmp.ne.s32.totalorder %s45, %s48
    %p54 = scmp.eq.s32.totalorder %s9, 0
    %p55 = por %p53, %p54
    %p56 = scmp.ne.s32.totalorder %s45, %s48
    %p57 = scmp.eq.s32.totalorder %s14, 1
    %p58 = por %p56, %p57
    %p59 = scmp.ne.s32.totalorder %s48, %s49
    %p60 = scmp.eq.s32.totalorder %s14, 0
    %p61 = por %p59, %p60
    %p62 = scmp.ne.s32.totalorder %s48, %s49
    %p63 = scmp.eq.s32.totalorder %s15, 1
    %p64 = por %p62, %p63
    %p66 = scmp.ne.s32.totalorder %s49, %s65
    %p67 = scmp.eq.s32.totalorder %s15, 0
    %p68 = por %p66, %p67
    %s69 = ssub.s32 %s9, %s16
    %p70 = scmp.eq.s32.totalorder %s69, 0
    %s72 = sadd.s32 %s71, 1
    %s73 = scalar_select %p70, %s71, %s72
    %p76 = pneg %p70
    %p77 = scmp.eq.s32.totalorder %s9, 1
    %p78 = por %p76, %p77
    %p79 = scmp.ne.s32.totalorder %s71, %s74
    %p80 = scmp.eq.s32.totalorder %s9, 0
    %p81 = por %p79, %p80
    %p82 = scmp.ne.s32.totalorder %s71, %s74
    %p83 = scmp.eq.s32.totalorder %s14, 1
    %p84 = por %p82, %p83
    %p85 = scmp.ne.s32.totalorder %s74, %s75
    %p86 = scmp.eq.s32.totalorder %s14, 0
    %p87 = por %p85, %p86
    %p88 = scmp.ne.s32.totalorder %s74, %s75
    %p89 = scmp.eq.s32.totalorder %s15, 1
    %p90 = por %p88, %p89
    %p92 = scmp.ne.s32.totalorder %s75, %s91
    %p93 = scmp.eq.s32.totalorder %s15, 0
    %p94 = por %p92, %p93
    %s95 = ssub.s32 %s9, %s16
    %p96 = scmp.eq.s32.totalorder %s95, 0
    %s98 = sadd.s32 %s97, 1
    %s99 = scalar_select %p96, %s97, %s98
    %p102 = pneg %p96
    %p103 = scmp.eq.s32.totalorder %s9, 1
    %p104 = por %p102, %p103
    %p105 = scmp.ne.s32.totalorder %s97, %s100
    %p106 = scmp.eq.s32.totalorder %s9, 0
    %p107 = por %p105, %p106
    %p108 = scmp.ne.s32.totalorder %s97, %s100
    %p109 = scmp.eq.s32.totalorder %s14, 1
    %p110 = por %p108, %p109
    %p111 = scmp.ne.s32.totalorder %s100, %s101
    %p112 = scmp.eq.s32.totalorder %s14, 0
    %p113 = por %p111, %p112
    %p114 = scmp.ne.s32.totalorder %s100, %s101
    %p115 = scmp.eq.s32.totalorder %s15, 1
    %p116 = por %p114, %p115
    %p118 = scmp.ne.s32.totalorder %s101, %s117
    %p119 = scmp.eq.s32.totalorder %s15, 0
    %p120 = por %p118, %p119
    %p121 = scmp.le.s32.totalorder 1, %s9
    %p122 = scmp.lt.s32.totalorder %s9, 3
    %p123 = pnand %p121, %p122
    %p124 = pneg %p123
    // Predicated region
    $region9: #{transformer_forward.11} parent=5 // pred_check
      _
    $region10: #{transformer_forward.11} parent=5 // pred_check_branch
      %126 = sbr.rel (%p123) target = $region12
    $region11: #{transformer_forward.11} parent=5 // pred_region
      %s127 = ssub.s32 %s9, 1
    $region12: #{transformer_forward.11} parent=5 // pred_fallthru
      _
    %p128 = scmp.lt.s32.totalorder %s9, 2
    // Predicated region
    $region13: #{transformer_forward.11} parent=5 // pred_check
      %p129 = pneg %p128
    $region14: #{transformer_forward.11} parent=5 // pred_check_branch
      %131 = sbr.rel (%p129) target = $region16
    $region15: #{transformer_forward.11} parent=5 // pred_region
      // Predicated region
      $region17: #{transformer_forward.11} parent=15 // pred_check
        %p132 = pneg %p29
      $region18: #{transformer_forward.11} parent=15 // pred_check_branch
        %134 = sbr.rel (%p132) target = $region20
      $region19: #{transformer_forward.11} parent=15 // pred_region
        %p135 = scmp.lt.s32.totalorder %s9, 1
        %s136 = scalar_select %p135, %s9, 1
        %s137 = smul.addr %s136, 2
        %s138 = smul.addr %s137, 8
        %s139 = scalar_lea.vmem %s0, %s138
      $region20: #{transformer_forward.11} parent=15 // pred_fallthru
        _
      // Predicated region
      $region21: #{transformer_forward.11} parent=15 // pred_check
        %p140 = pneg %p55
      $region22: #{transformer_forward.11} parent=15 // pred_check_branch
        %142 = sbr.rel (%p140) target = $region24
      $region23: #{transformer_forward.11} parent=15 // pred_region
        %p143 = scmp.lt.s32.totalorder %s9, 1
        %s144 = scalar_select %p143, %s9, 1
        %s145 = smul.addr %s144, 2
        %s146 = smul.addr %s145, 8
        %s147 = scalar_lea.vmem %s1, %s146
      $region24: #{transformer_forward.11} parent=15 // pred_fallthru
        _
      // Predicated region
      $region25: #{transformer_forward.11} parent=15 // pred_check
        %p148 = pneg %p81
      $region26: #{transformer_forward.11} parent=15 // pred_check_branch
        %150 = sbr.rel (%p148) target = $region28
      $region27: #{transformer_forward.11} parent=15 // pred_region
        %p151 = scmp.lt.s32.totalorder %s9, 1
        %s152 = scalar_select %p151, %s9, 1
        %s153 = smul.addr %s152, 2
        %s154 = smul.addr %s153, 8
        %s155 = scalar_lea.vmem %s2, %s154
      $region28: #{transformer_forward.11} parent=15 // pred_fallthru
        _
    $region16: #{transformer_forward.11} parent=5 // pred_fallthru
      _
    %p156 = scmp.le.s32.totalorder 1, %s9
    %p157 = scmp.lt.s32.totalorder %s9, 3
    %p158 = pnand %p156, %p157
    %p159 = pneg %p158
    // Predicated region
    $region29: #{transformer_forward.11} parent=5 // pred_check
      _
    $region30: #{transformer_forward.11} parent=5 // pred_check_branch
      %161 = sbr.rel (%p158) target = $region32
    $region31: #{transformer_forward.11} parent=5 // pred_region
      %s162 = ssub.s32 %s9, 1
      %p163 = scmp.lt.s32.totalorder %s14, 1
      %s164 = scalar_select %p163, %s14, 1
      %s165 = smul.addr %s164, 2
      %s166 = smul.addr %s165, 8
      %s167 = scalar_lea.vmem %s0, %s166
      %p168 = pneg %p35
      %p169 = pneg %p32
      %p170 = scmp.lt.s32.totalorder %s14, 1
      %s171 = scalar_select %p170, %s14, 1
      %s172 = smul.addr %s171, 2
      %s173 = smul.addr %s172, 8
      %s174 = scalar_lea.vmem %s1, %s173
      %p175 = pneg %p61
      %p176 = pneg %p58
      %p177 = scmp.lt.s32.totalorder %s14, 1
      %s178 = scalar_select %p177, %s14, 1
      %s179 = smul.addr %s178, 2
      %s180 = smul.addr %s179, 8
      %s181 = scalar_lea.vmem %s2, %s180
      %p182 = pneg %p87
      %p183 = pneg %p84
      %p184 = pneg %p113
      %p185 = pneg %p110
      %p186 = scmp.lt.s32.totalorder %s14, 1
      %s187 = scalar_select %p186, %s14, 1
      %s188 = smul.addr %s187, 2
      %s189 = smul.addr %s188, 8
      %s190 = scalar_lea.vmem %s3, %s189
      %p191 = scmp.lt.s32.totalorder %s14, 1
      %s192 = scalar_select %p191, %s14, 1
      %s193 = smul.addr %s192, 2
      %s194 = smul.addr %s193, 8
      %s195 = scalar_lea.vmem %s0, %s194
      %p196 = scmp.lt.s32.totalorder %s14, 1
      %s197 = scalar_select %p196, %s14, 1
      %s198 = smul.addr %s197, 2
      %s199 = smul.addr %s198, 8
      %s200 = scalar_lea.vmem %s1, %s199
      %p201 = scmp.lt.s32.totalorder %s14, 1
      %s202 = scalar_select %p201, %s14, 1
      %s203 = smul.addr %s202, 2
      %s204 = smul.addr %s203, 8
      %s205 = scalar_lea.vmem %s2, %s204
      %p206 = scmp.lt.s32.totalorder %s14, 1
      %s207 = scalar_select %p206, %s14, 1
      %s208 = smul.addr %s207, 2
      %s209 = smul.addr %s208, 8
      %s210 = scalar_lea.vmem %s3, %s209
      %v211 = vld [vmem:[%s195] sm:$0xff]
      %v212 = vld [vmem:[%s195 + $0x8] sm:$0x1]
      %v213 = vld [vmem:[%s200] sm:$0xff]
      %v214 = vld [vmem:[%s200 + $0x8] sm:$0x1]
      %v215 = vld [vmem:[%s205] sm:$0xff]
      %v216 = vld [vmem:[%s205 + $0x8] sm:$0x1]
      %v217 = vmul.f32 %v211, 0.35355338
      %v218 = vmul.f32 %v212, 0.35355338
      %vm219 = vcmask 64512
      %v221 = vsel %vm219, %v217, 0
      %v224 = vsel %vm219, %v218, 0
      %v227 = vsel %vm219, %v213, 0
      %v230 = vsel %vm219, %v214, 0
      %232 = vmatprep.subr.mxu0 0.0
      %233 = vmatpush1.xpose.msra.mxu0 %v227
      %234 = vmatprep.subr.mxu0 0.0
      %235 = vmatpush1.xpose.msra.mxu0 %v230
      %236 = vmatprep.subr.mxu0 0.0
      %237 = vmatpush1.xpose.msra.mxu0 0.0
      %238 = vmatprep.subr.mxu0 0.0
      %239 = vmatpush1.xpose.msra.mxu0 0.0
      %240 = vmatprep.subr.mxu0 0.0
      %241 = vmatpush1.xpose.msra.mxu0 0.0
      %242 = vmatprep.subr.mxu0 0.0
      %243 = vmatpush1.xpose.msra.mxu0 0.0
      %244 = vmatprep.subr.mxu0 0.0
      %245 = vmatpush1.xpose.msra.mxu0 0.0
      %246 = vmatprep.subr.mxu0 0.0
      %247 = vmatpush1.xpose.msra.mxu0 0.0
      %248 = vmatprep.subr.mxu0 0.0
      %249 = vmatpush1.xpose.msra.mxu0 0.0
      %250 = vmatprep.subr.mxu0 0.0
      %251 = vmatpush1.xpose.msra.mxu0 0.0
      %252 = vmatprep.subr.mxu0 0.0
      %253 = vmatpush1.xpose.msra.mxu0 0.0
      %254 = vmatprep.subr.mxu0 0.0
      %255 = vmatpush1.xpose.msra.mxu0 0.0
      %256 = vmatprep.subr.mxu0 0.0
      %257 = vmatpush1.xpose.msra.mxu0 0.0
      %258 = vmatprep.subr.mxu0 0.0
      %259 = vmatpush1.xpose.msra.mxu0 0.0
      %260 = vmatprep.subr.mxu0 0.0
      %261 = vmatpush1.xpose.msra.mxu0 0.0
      %262 = vmatprep.subr.mxu0 0.0
      %263 = vmatpush1.xpose.msra.mxu0 0.0
      %264 = vmatprep.subr.mxu0 0.0
      %265 = vmatpush1.xpose.msra.mxu0 0.0
      %266 = vmatprep.subr.mxu0 0.0
      %267 = vmatpush1.xpose.msra.mxu0 0.0
      %268 = vmatprep.subr.mxu0 0.0
      %269 = vmatpush1.xpose.msra.mxu0 0.0
      %270 = vmatprep.subr.mxu0 0.0
      %271 = vmatpush1.xpose.msra.mxu0 0.0
      %272 = vmatprep.subr.mxu0 0.0
      %273 = vmatpush1.xpose.msra.mxu0 0.0
      %274 = vmatprep.subr.mxu0 0.0
      %275 = vmatpush1.xpose.msra.mxu0 0.0
      %276 = vmatprep.subr.mxu0 0.0
      %277 = vmatpush1.xpose.msra.mxu0 0.0
      %278 = vmatprep.subr.mxu0 0.0
      %279 = vmatpush1.xpose.msra.mxu0 0.0
      %280 = vmatprep.subr.mxu0 0.0
      %281 = vmatpush1.xpose.msra.mxu0 0.0
      %282 = vmatprep.subr.mxu0 0.0
      %283 = vmatpush1.xpose.msra.mxu0 0.0
      %284 = vmatprep.subr.mxu0 0.0
      %285 = vmatpush1.xpose.msra.mxu0 0.0
      %286 = vmatprep.subr.mxu0 0.0
      %287 = vmatpush1.xpose.msra.mxu0 0.0
      %288 = vmatprep.subr.mxu0 0.0
      %289 = vmatpush1.xpose.msra.mxu0 0.0
      %290 = vmatprep.subr.mxu0 0.0
      %291 = vmatpush1.xpose.msra.mxu0 0.0
      %292 = vmatprep.subr.mxu0 0.0
      %293 = vmatpush1.xpose.msra.mxu0 0.0
      %294 = vmatprep.subr.mxu0 0.0
      %295 = vmatpush1.xpose.msra.mxu0 0.0
      %296 = vmatprep.mubr.f32.mxu0 0.0
      %297 = vmatmul.mubr.f32.gmra.mrb[0].mxu0 %v221
      %v298 = vpop.f32.mrb[0].mxu0
      %v299 = vadd.f32 0.0, %v298
      %v300 = vpop.f32.mrb[0].mxu0
      %301 = vmatprep.mubr.f32.mxu0 0.0
      %302 = vmatmul.mubr.f32.gmra.mrb[0].mxu0 %v224
      %v303 = vpop.f32.mrb[0].mxu0
      %v304 = vadd.f32 0.0, %v303
      %v305 = vpop.f32.mrb[0].mxu0
      %306 = vdwg.mxu0
      %vm307 = vcmask 72704
      %v308 = vsel %vm307, %v299, -inf
      %309 = vmax.xlane.f32.xlu0 %v308
      %v310 = vpop.xlane.xlu0 %309
      %vm311 = vcmask 65536
      %v312 = vsel %vm311, %v304, -inf
      %313 = vmax.xlane.f32.xlu0 %v312
      %v314 = vpop.xlane.xlu0 %313
      %v315 = vsub.f32 %v299, %v310
      %v316 = vsub.f32 %v304, %v314
      %v317 = vmul.f32 %v315, 1.442695
      %v318 = vpow.pop %v317
      %v319 = vmul.f32 %v316, 1.442695
      %v320 = vpow.pop %v319
      %v321 = vsel %vm307, %v318, 0.0
      %322 = vadd.xlane.f32.xlu0 %v321
      %v323 = vpop.xlane.xlu0 %322
      %v324 = vsel %vm311, %v320, 0.0
      %325 = vadd.xlane.f32.xlu0 %v324
      %v326 = vpop.xlane.xlu0 %325
      %v328 = vsel %vm307, %v318, 0
      %v331 = vsel %vm307, %v320, 0
      %vm333 = vcmask 1040384
      %v335 = vsel %vm333, %v216, 0
      %337 = vmatprep.subr.mxu0 0.0
      %338 = vmatpush1.msra.mxu0 %v215
      %339 = vmatprep.subr.mxu0 0.0
      %340 = vmatpush1.msra.mxu0 %v335
      %341 = vmatprep.subr.mxu0 0.0
      %342 = vmatpush1.msra.mxu0 0.0
      %343 = vmatprep.subr.mxu0 0.0
      %344 = vmatpush1.msra.mxu0 0.0
      %345 = vmatprep.subr.mxu0 0.0
      %346 = vmatpush1.msra.mxu0 0.0
      %347 = vmatprep.subr.mxu0 0.0
      %348 = vmatpush1.msra.mxu0 0.0
      %349 = vmatprep.subr.mxu0 0.0
      %350 = vmatpush1.msra.mxu0 0.0
      %351 = vmatprep.subr.mxu0 0.0
      %352 = vmatpush1.msra.mxu0 0.0
      %353 = vmatprep.subr.mxu0 0.0
      %354 = vmatpush1.msra.mxu0 0.0
      %355 = vmatprep.subr.mxu0 0.0
      %356 = vmatpush1.msra.mxu0 0.0
      %357 = vmatprep.subr.mxu0 0.0
      %358 = vmatpush1.msra.mxu0 0.0
      %359 = vmatprep.subr.mxu0 0.0
      %360 = vmatpush1.msra.mxu0 0.0
      %361 = vmatprep.subr.mxu0 0.0
      %362 = vmatpush1.msra.mxu0 0.0
      %363 = vmatprep.subr.mxu0 0.0
      %364 = vmatpush1.msra.mxu0 0.0
      %365 = vmatprep.subr.mxu0 0.0
      %366 = vmatpush1.msra.mxu0 0.0
      %367 = vmatprep.subr.mxu0 0.0
      %368 = vmatpush1.msra.mxu0 0.0
      %369 = vmatprep.subr.mxu0 0.0
      %370 = vmatpush1.msra.mxu0 0.0
      %371 = vmatprep.subr.mxu0 0.0
      %372 = vmatpush1.msra.mxu0 0.0
      %373 = vmatprep.subr.mxu0 0.0
      %374 = vmatpush1.msra.mxu0 0.0
      %375 = vmatprep.subr.mxu0 0.0
      %376 = vmatpush1.msra.mxu0 0.0
      %377 = vmatprep.subr.mxu0 0.0
      %378 = vmatpush1.msra.mxu0 0.0
      %379 = vmatprep.subr.mxu0 0.0
      %380 = vmatpush1.msra.mxu0 0.0
      %381 = vmatprep.subr.mxu0 0.0
      %382 = vmatpush1.msra.mxu0 0.0
      %383 = vmatprep.subr.mxu0 0.0
      %384 = vmatpush1.msra.mxu0 0.0
      %385 = vmatprep.subr.mxu0 0.0
      %386 = vmatpush1.msra.mxu0 0.0
      %387 = vmatprep.subr.mxu0 0.0
      %388 = vmatpush1.msra.mxu0 0.0
      %389 = vmatprep.subr.mxu0 0.0
      %390 = vmatpush1.msra.mxu0 0.0
      %391 = vmatprep.subr.mxu0 0.0
      %392 = vmatpush1.msra.mxu0 0.0
      %393 = vmatprep.subr.mxu0 0.0
      %394 = vmatpush1.msra.mxu0 0.0
      %395 = vmatprep.subr.mxu0 0.0
      %396 = vmatpush1.msra.mxu0 0.0
      %397 = vmatprep.subr.mxu0 0.0
      %398 = vmatpush1.msra.mxu0 0.0
      %399 = vmatprep.subr.mxu0 0.0
      %400 = vmatpush1.msra.mxu0 0.0
      %401 = vmatprep.mubr.f32.mxu0 0.0
      %402 = vmatmul.mubr.f32.gmra.mrb[0].mxu0 %v328
      %v403 = vpop.f32.mrb[0].mxu0
      %v404 = vadd.f32 0.0, %v403
      %v405 = vpop.f32.mrb[0].mxu0
      %406 = vmatprep.mubr.f32.mxu0 0.0
      %407 = vmatmul.mubr.f32.gmra.mrb[0].mxu0 %v331
      %v408 = vpop.f32.mrb[0].mxu0
      %v409 = vadd.f32 0.0, %v408
      %v410 = vpop.f32.mrb[0].mxu0
      %411 = vdwg.mxu0
      %v412 = vrcp.pop %v323
      %v413 = vmul.f32 %v404, %v412
      %v414 = vrcp.pop %v326
      %v415 = vmul.f32 %v409, %v414
      %416 = vrot.lane.b32.xlu0 %v217, 120
      %v417 = vpop.permute.xlu0 %416
      %418 = vrot.lane.b32.xlu0 %v218, 120
      %v419 = vpop.permute.xlu0 %418
      %420 = vrot.lane.b32.xlu0 %v213, 120
      %v421 = vpop.permute.xlu0 %420
      %422 = vrot.lane.b32.xlu0 %v214, 120
      %v423 = vpop.permute.xlu0 %422
      %v424 = vsel %vm219, %v417, 0
      %v426 = vsel %vm219, %v419, 0
      %v428 = vsel %vm219, %v421, 0
      %v430 = vsel %vm219, %v423, 0
      %432 = vmatprep.subr.mxu0 0.0
      %433 = vmatpush1.xpose.msra.mxu0 %v428
      %434 = vmatprep.subr.mxu0 0.0
      %435 = vmatpush1.xpose.msra.mxu0 %v430
      %436 = vmatprep.subr.mxu0 0.0
      %437 = vmatpush1.xpose.msra.mxu0 0.0
      %438 = vmatprep.subr.mxu0 0.0
      %439 = vmatpush1.xpose.msra.mxu0 0.0
      %440 = vmatprep.subr.mxu0 0.0
      %441 = vmatpush1.xpose.msra.mxu0 0.0
      %442 = vmatprep.subr.mxu0 0.0
      %443 = vmatpush1.xpose.msra.mxu0 0.0
      %444 = vmatprep.subr.mxu0 0.0
      %445 = vmatpush1.xpose.msra.mxu0 0.0
      %446 = vmatprep.subr.mxu0 0.0
      %447 = vmatpush1.xpose.msra.mxu0 0.0
      %448 = vmatprep.subr.mxu0 0.0
      %449 = vmatpush1.xpose.msra.mxu0 0.0
      %450 = vmatprep.subr.mxu0 0.0
      %451 = vmatpush1.xpose.msra.mxu0 0.0
      %452 = vmatprep.subr.mxu0 0.0
      %453 = vmatpush1.xpose.msra.mxu0 0.0
      %454 = vmatprep.subr.mxu0 0.0
      %455 = vmatpush1.xpose.msra.mxu0 0.0
      %456 = vmatprep.subr.mxu0 0.0
      %457 = vmatpush1.xpose.msra.mxu0 0.0
      %458 = vmatprep.subr.mxu0 0.0
      %459 = vmatpush1.xpose.msra.mxu0 0.0
      %460 = vmatprep.subr.mxu0 0.0
      %461 = vmatpush1.xpose.msra.mxu0 0.0
      %462 = vmatprep.subr.mxu0 0.0
      %463 = vmatpush1.xpose.msra.mxu0 0.0
      %464 = vmatprep.subr.mxu0 0.0
      %465 = vmatpush1.xpose.msra.mxu0 0.0
      %466 = vmatprep.subr.mxu0 0.0
      %467 = vmatpush1.xpose.msra.mxu0 0.0
      %468 = vmatprep.subr.mxu0 0.0
      %469 = vmatpush1.xpose.msra.mxu0 0.0
      %470 = vmatprep.subr.mxu0 0.0
      %471 = vmatpush1.xpose.msra.mxu0 0.0
      %472 = vmatprep.subr.mxu0 0.0
      %473 = vmatpush1.xpose.msra.mxu0 0.0
      %474 = vmatprep.subr.mxu0 0.0
      %475 = vmatpush1.xpose.msra.mxu0 0.0
      %476 = vmatprep.subr.mxu0 0.0
      %477 = vmatpush1.xpose.msra.mxu0 0.0
      %478 = vmatprep.subr.mxu0 0.0
      %479 = vmatpush1.xpose.msra.mxu0 0.0
      %480 = vmatprep.subr.mxu0 0.0
      %481 = vmatpush1.xpose.msra.mxu0 0.0
      %482 = vmatprep.subr.mxu0 0.0
      %483 = vmatpush1.xpose.msra.mxu0 0.0
      %484 = vmatprep.subr.mxu0 0.0
      %485 = vmatpush1.xpose.msra.mxu0 0.0
      %486 = vmatprep.subr.mxu0 0.0
      %487 = vmatpush1.xpose.msra.mxu0 0.0
      %488 = vmatprep.subr.mxu0 0.0
      %489 = vmatpush1.xpose.msra.mxu0 0.0
      %490 = vmatprep.subr.mxu0 0.0
      %491 = vmatpush1.xpose.msra.mxu0 0.0
      %492 = vmatprep.subr.mxu0 0.0
      %493 = vmatpush1.xpose.msra.mxu0 0.0
      %494 = vmatprep.subr.mxu0 0.0
      %495 = vmatpush1.xpose.msra.mxu0 0.0
      %496 = vmatprep.mubr.f32.mxu0 0.0
      %497 = vmatmul.mubr.f32.gmra.mrb[0].mxu0 %v424
      %v498 = vpop.f32.mrb[0].mxu0
      %v499 = vadd.f32 0.0, %v498
      %v500 = vpop.f32.mrb[0].mxu0
      %501 = vmatprep.mubr.f32.mxu0 0.0
      %502 = vmatmul.mubr.f32.gmra.mrb[0].mxu0 %v426
      %v503 = vpop.f32.mrb[0].mxu0
      %v504 = vadd.f32 0.0, %v503
      %v505 = vpop.f32.mrb[0].mxu0
      %506 = vdwg.mxu0
      %v507 = vsel %vm307, %v499, -inf
      %508 = vmax.xlane.f32.xlu0 %v507
      %v509 = vpop.xlane.xlu0 %508
      %v510 = vsel %vm311, %v504, -inf
      %511 = vmax.xlane.f32.xlu0 %v510
      %v512 = vpop.xlane.xlu0 %511
      %v513 = vsub.f32 %v499, %v509
      %v514 = vsub.f32 %v504, %v512
      %v515 = vmul.f32 %v513, 1.442695
      %v516 = vpow.pop %v515
      %v517 = vmul.f32 %v514, 1.442695
      %v518 = vpow.pop %v517
      %v519 = vsel %vm307, %v516, 0.0
      %520 = vadd.xlane.f32.xlu0 %v519
      %v521 = vpop.xlane.xlu0 %520
      %v522 = vsel %vm311, %v518, 0.0
      %523 = vadd.xlane.f32.xlu0 %v522
      %v524 = vpop.xlane.xlu0 %523
      %526 = vrot.lane.b32.xlu0 %v215, 120
      %v527 = vpop.permute.xlu0 %526
      %528 = vrot.lane.b32.xlu0 %v216, 120
      %v529 = vpop.permute.xlu0 %528
      %v532 = vsel %vm307, %v516, 0
      %v535 = vsel %vm307, %v518, 0
      %v537 = vsel %vm333, %v529, 0
      %539 = vmatprep.subr.mxu0 0.0
      %540 = vmatpush1.msra.mxu0 %v527
      %541 = vmatprep.subr.mxu0 0.0
      %542 = vmatpush1.msra.mxu0 %v537
      %543 = vmatprep.subr.mxu0 0.0
      %544 = vmatpush1.msra.mxu0 0.0
      %545 = vmatprep.subr.mxu0 0.0
      %546 = vmatpush1.msra.mxu0 0.0
      %547 = vmatprep.subr.mxu0 0.0
      %548 = vmatpush1.msra.mxu0 0.0
      %549 = vmatprep.subr.mxu0 0.0
      %550 = vmatpush1.msra.mxu0 0.0
      %551 = vmatprep.subr.mxu0 0.0
      %552 = vmatpush1.msra.mxu0 0.0
      %553 = vmatprep.subr.mxu0 0.0
      %554 = vmatpush1.msra.mxu0 0.0
      %555 = vmatprep.subr.mxu0 0.0
      %556 = vmatpush1.msra.mxu0 0.0
      %557 = vmatprep.subr.mxu0 0.0
      %558 = vmatpush1.msra.mxu0 0.0
      %559 = vmatprep.subr.mxu0 0.0
      %560 = vmatpush1.msra.mxu0 0.0
      %561 = vmatprep.subr.mxu0 0.0
      %562 = vmatpush1.msra.mxu0 0.0
      %563 = vmatprep.subr.mxu0 0.0
      %564 = vmatpush1.msra.mxu0 0.0
      %565 = vmatprep.subr.mxu0 0.0
      %566 = vmatpush1.msra.mxu0 0.0
      %567 = vmatprep.subr.mxu0 0.0
      %568 = vmatpush1.msra.mxu0 0.0
      %569 = vmatprep.subr.mxu0 0.0
      %570 = vmatpush1.msra.mxu0 0.0
      %571 = vmatprep.subr.mxu0 0.0
      %572 = vmatpush1.msra.mxu0 0.0
      %573 = vmatprep.subr.mxu0 0.0
      %574 = vmatpush1.msra.mxu0 0.0
      %575 = vmatprep.subr.mxu0 0.0
      %576 = vmatpush1.msra.mxu0 0.0
      %577 = vmatprep.subr.mxu0 0.0
      %578 = vmatpush1.msra.mxu0 0.0
      %579 = vmatprep.subr.mxu0 0.0
      %580 = vmatpush1.msra.mxu0 0.0
      %581 = vmatprep.subr.mxu0 0.0
      %582 = vmatpush1.msra.mxu0 0.0
      %583 = vmatprep.subr.mxu0 0.0
      %584 = vmatpush1.msra.mxu0 0.0
      %585 = vmatprep.subr.mxu0 0.0
      %586 = vmatpush1.msra.mxu0 0.0
      %587 = vmatprep.subr.mxu0 0.0
      %588 = vmatpush1.msra.mxu0 0.0
      %589 = vmatprep.subr.mxu0 0.0
      %590 = vmatpush1.msra.mxu0 0.0
      %591 = vmatprep.subr.mxu0 0.0
      %592 = vmatpush1.msra.mxu0 0.0
      %593 = vmatprep.subr.mxu0 0.0
      %594 = vmatpush1.msra.mxu0 0.0
      %595 = vmatprep.subr.mxu0 0.0
      %596 = vmatpush1.msra.mxu0 0.0
      %597 = vmatprep.subr.mxu0 0.0
      %598 = vmatpush1.msra.mxu0 0.0
      %599 = vmatprep.subr.mxu0 0.0
      %600 = vmatpush1.msra.mxu0 0.0
      %601 = vmatprep.subr.mxu0 0.0
      %602 = vmatpush1.msra.mxu0 0.0
      %603 = vmatprep.mubr.f32.mxu0 0.0
      %604 = vmatmul.mubr.f32.gmra.mrb[0].mxu0 %v532
      %v605 = vpop.f32.mrb[0].mxu0
      %v606 = vadd.f32 0.0, %v605
      %v607 = vpop.f32.mrb[0].mxu0
      %608 = vmatprep.mubr.f32.mxu0 0.0
      %609 = vmatmul.mubr.f32.gmra.mrb[0].mxu0 %v535
      %v610 = vpop.f32.mrb[0].mxu0
      %v611 = vadd.f32 0.0, %v610
      %v612 = vpop.f32.mrb[0].mxu0
      %613 = vdwg.mxu0
      %v614 = vrcp.pop %v521
      %v615 = vmul.f32 %v606, %v614
      %v616 = vrcp.pop %v524
      %v617 = vmul.f32 %v611, %v616
      %618 = vrot.lane.b32.xlu0 %v217, 112
      %v619 = vpop.permute.xlu0 %618
      %620 = vrot.lane.b32.xlu0 %v218, 112
      %v621 = vpop.permute.xlu0 %620
      %622 = vrot.lane.b32.xlu0 %v213, 112
      %v623 = vpop.permute.xlu0 %622
      %624 = vrot.lane.b32.xlu0 %v214, 112
      %v625 = vpop.permute.xlu0 %624
      %v626 = vsel %vm219, %v619, 0
      %v628 = vsel %vm219, %v621, 0
      %v630 = vsel %vm219, %v623, 0
      %v632 = vsel %vm219, %v625, 0
      %634 = vmatprep.subr.mxu0 0.0
      %635 = vmatpush1.xpose.msra.mxu0 %v630
      %636 = vmatprep.subr.mxu0 0.0
      %637 = vmatpush1.xpose.msra.mxu0 %v632
      %638 = vmatprep.subr.mxu0 0.0
      %639 = vmatpush1.xpose.msra.mxu0 0.0
      %640 = vmatprep.subr.mxu0 0.0
      %641 = vmatpush1.xpose.msra.mxu0 0.0
      %642 = vmatprep.subr.mxu0 0.0
      %643 = vmatpush1.xpose.msra.mxu0 0.0
      %644 = vmatprep.subr.mxu0 0.0
      %645 = vmatpush1.xpose.msra.mxu0 0.0
      %646 = vmatprep.subr.mxu0 0.0
      %647 = vmatpush1.xpose.msra.mxu0 0.0
      %648 = vmatprep.subr.mxu0 0.0
      %649 = vmatpush1.xpose.msra.mxu0 0.0
      %650 = vmatprep.subr.mxu0 0.0
      %651 = vmatpush1.xpose.msra.mxu0 0.0
      %652 = vmatprep.subr.mxu0 0.0
      %653 = vmatpush1.xpose.msra.mxu0 0.0
      %654 = vmatprep.subr.mxu0 0.0
      %655 = vmatpush1.xpose.msra.mxu0 0.0
      %656 = vmatprep.subr.mxu0 0.0
      %657 = vmatpush1.xpose.msra.mxu0 0.0
      %658 = vmatprep.subr.mxu0 0.0
      %659 = vmatpush1.xpose.msra.mxu0 0.0
      %660 = vmatprep.subr.mxu0 0.0
      %661 = vmatpush1.xpose.msra.mxu0 0.0
      %662 = vmatprep.subr.mxu0 0.0
      %663 = vmatpush1.xpose.msra.mxu0 0.0
      %664 = vmatprep.subr.mxu0 0.0
      %665 = vmatpush1.xpose.msra.mxu0 0.0
      %666 = vmatprep.subr.mxu0 0.0
      %667 = vmatpush1.xpose.msra.mxu0 0.0
      %668 = vmatprep.subr.mxu0 0.0
      %669 = vmatpush1.xpose.msra.mxu0 0.0
      %670 = vmatprep.subr.mxu0 0.0
      %671 = vmatpush1.xpose.msra.mxu0 0.0
      %672 = vmatprep.subr.mxu0 0.0
      %673 = vmatpush1.xpose.msra.mxu0 0.0
      %674 = vmatprep.subr.mxu0 0.0
      %675 = vmatpush1.xpose.msra.mxu0 0.0
      %676 = vmatprep.subr.mxu0 0.0
      %677 = vmatpush1.xpose.msra.mxu0 0.0
      %678 = vmatprep.subr.mxu0 0.0
      %679 = vmatpush1.xpose.msra.mxu0 0.0
      %680 = vmatprep.subr.mxu0 0.0
      %681 = vmatpush1.xpose.msra.mxu0 0.0
      %682 = vmatprep.subr.mxu0 0.0
      %683 = vmatpush1.xpose.msra.mxu0 0.0
      %684 = vmatprep.subr.mxu0 0.0
      %685 = vmatpush1.xpose.msra.mxu0 0.0
      %686 = vmatprep.subr.mxu0 0.0
      %687 = vmatpush1.xpose.msra.mxu0 0.0
      %688 = vmatprep.subr.mxu0 0.0
      %689 = vmatpush1.xpose.msra.mxu0 0.0
      %690 = vmatprep.subr.mxu0 0.0
      %691 = vmatpush1.xpose.msra.mxu0 0.0
      %692 = vmatprep.subr.mxu0 0.0
      %693 = vmatpush1.xpose.msra.mxu0 0.0
      %694 = vmatprep.subr.mxu0 0.0
      %695 = vmatpush1.xpose.msra.mxu0 0.0
      %696 = vmatprep.subr.mxu0 0.0
      %697 = vmatpush1.xpose.msra.mxu0 0.0
      %698 = vmatprep.mubr.f32.mxu0 0.0
      %699 = vmatmul.mubr.f32.gmra.mrb[0].mxu0 %v626
      %v700 = vpop.f32.mrb[0].mxu0
      %v701 = vadd.f32 0.0, %v700
      %v702 = vpop.f32.mrb[0].mxu0
      %703 = vmatprep.mubr.f32.mxu0 0.0
      %704 = vmatmul.mubr.f32.gmra.mrb[0].mxu0 %v628
      %v705 = vpop.f32.mrb[0].mxu0
      %v706 = vadd.f32 0.0, %v705
      %v707 = vpop.f32.mrb[0].mxu0
      %708 = vdwg.mxu0
      %v709 = vsel %vm307, %v701, -inf
      %710 = vmax.xlane.f32.xlu0 %v709
      %v711 = vpop.xlane.xlu0 %710
      %v712 = vsel %vm311, %v706, -inf
      %713 = vmax.xlane.f32.xlu0 %v712
      %v714 = vpop.xlane.xlu0 %713
      %v715 = vsub.f32 %v701, %v711
      %v716 = vsub.f32 %v706, %v714
      %v717 = vmul.f32 %v715, 1.442695
      %v718 = vpow.pop %v717
      %v719 = vmul.f32 %v716, 1.442695
      %v720 = vpow.pop %v719
      %v721 = vsel %vm307, %v718, 0.0
      %722 = vadd.xlane.f32.xlu0 %v721
      %v723 = vpop.xlane.xlu0 %722
      %v724 = vsel %vm311, %v720, 0.0
      %725 = vadd.xlane.f32.xlu0 %v724
      %v726 = vpop.xlane.xlu0 %725
      %727 = vrot.lane.b32.xlu0 %v215, 112
      %v728 = vpop.permute.xlu0 %727
      %729 = vrot.lane.b32.xlu0 %v216, 112
      %v730 = vpop.permute.xlu0 %729
      %v733 = vsel %vm307, %v718, 0
      %v736 = vsel %vm307, %v720, 0
      %v738 = vsel %vm333, %v730, 0
      %740 = vmatprep.subr.mxu0 0.0
      %741 = vmatpush1.msra.mxu0 %v728
      %742 = vmatprep.subr.mxu0 0.0
      %743 = vmatpush1.msra.mxu0 %v738
      %744 = vmatprep.subr.mxu0 0.0
      %745 = vmatpush1.msra.mxu0 0.0
      %746 = vmatprep.subr.mxu0 0.0
      %747 = vmatpush1.msra.mxu0 0.0
      %748 = vmatprep.subr.mxu0 0.0
      %749 = vmatpush1.msra.mxu0 0.0
      %750 = vmatprep.subr.mxu0 0.0
      %751 = vmatpush1.msra.mxu0 0.0
      %752 = vmatprep.subr.mxu0 0.0
      %753 = vmatpush1.msra.mxu0 0.0
      %754 = vmatprep.subr.mxu0 0.0
      %755 = vmatpush1.msra.mxu0 0.0
      %756 = vmatprep.subr.mxu0 0.0
      %757 = vmatpush1.msra.mxu0 0.0
      %758 = vmatprep.subr.mxu0 0.0
      %759 = vmatpush1.msra.mxu0 0.0
      %760 = vmatprep.subr.mxu0 0.0
      %761 = vmatpush1.msra.mxu0 0.0
      %762 = vmatprep.subr.mxu0 0.0
      %763 = vmatpush1.msra.mxu0 0.0
      %764 = vmatprep.subr.mxu0 0.0
      %765 = vmatpush1.msra.mxu0 0.0
      %766 = vmatprep.subr.mxu0 0.0
      %767 = vmatpush1.msra.mxu0 0.0
      %768 = vmatprep.subr.mxu0 0.0
      %769 = vmatpush1.msra.mxu0 0.0
      %770 = vmatprep.subr.mxu0 0.0
      %771 = vmatpush1.msra.mxu0 0.0
      %772 = vmatprep.subr.mxu0 0.0
      %773 = vmatpush1.msra.mxu0 0.0
      %774 = vmatprep.subr.mxu0 0.0
      %775 = vmatpush1.msra.mxu0 0.0
      %776 = vmatprep.subr.mxu0 0.0
      %777 = vmatpush1.msra.mxu0 0.0
      %778 = vmatprep.subr.mxu0 0.0
      %779 = vmatpush1.msra.mxu0 0.0
      %780 = vmatprep.subr.mxu0 0.0
      %781 = vmatpush1.msra.mxu0 0.0
      %782 = vmatprep.subr.mxu0 0.0
      %783 = vmatpush1.msra.mxu0 0.0
      %784 = vmatprep.subr.mxu0 0.0
      %785 = vmatpush1.msra.mxu0 0.0
      %786 = vmatprep.subr.mxu0 0.0
      %787 = vmatpush1.msra.mxu0 0.0
      %788 = vmatprep.subr.mxu0 0.0
      %789 = vmatpush1.msra.mxu0 0.0
      %790 = vmatprep.subr.mxu0 0.0
      %791 = vmatpush1.msra.mxu0 0.0
      %792 = vmatprep.subr.mxu0 0.0
      %793 = vmatpush1.msra.mxu0 0.0
      %794 = vmatprep.subr.mxu0 0.0
      %795 = vmatpush1.msra.mxu0 0.0
      %796 = vmatprep.subr.mxu0 0.0
      %797 = vmatpush1.msra.mxu0 0.0
      %798 = vmatprep.subr.mxu0 0.0
      %799 = vmatpush1.msra.mxu0 0.0
      %800 = vmatprep.subr.mxu0 0.0
      %801 = vmatpush1.msra.mxu0 0.0
      %802 = vmatprep.subr.mxu0 0.0
      %803 = vmatpush1.msra.mxu0 0.0
      %804 = vmatprep.mubr.f32.mxu0 0.0
      %805 = vmatmul.mubr.f32.gmra.mrb[0].mxu0 %v733
      %v806 = vpop.f32.mrb[0].mxu0
      %v807 = vadd.f32 0.0, %v806
      %v808 = vpop.f32.mrb[0].mxu0
      %809 = vmatprep.mubr.f32.mxu0 0.0
      %810 = vmatmul.mubr.f32.gmra.mrb[0].mxu0 %v736
      %v811 = vpop.f32.mrb[0].mxu0
      %v812 = vadd.f32 0.0, %v811
      %v813 = vpop.f32.mrb[0].mxu0
      %814 = vdwg.mxu0
      %v815 = vrcp.pop %v723
      %v816 = vmul.f32 %v807, %v815
      %v817 = vrcp.pop %v726
      %v818 = vmul.f32 %v812, %v817
      %819 = vrot.lane.b32.xlu0 %v217, 104
      %v820 = vpop.permute.xlu0 %819
      %821 = vrot.lane.b32.xlu0 %v218, 104
      %v822 = vpop.permute.xlu0 %821
      %823 = vrot.lane.b32.xlu0 %v213, 104
      %v824 = vpop.permute.xlu0 %823
      %825 = vrot.lane.b32.xlu0 %v214, 104
      %v826 = vpop.permute.xlu0 %825
      %v827 = vsel %vm219, %v820, 0
      %v829 = vsel %vm219, %v822, 0
      %v831 = vsel %vm219, %v824, 0
      %v833 = vsel %vm219, %v826, 0
      %835 = vmatprep.subr.mxu0 0.0
      %836 = vmatpush1.xpose.msra.mxu0 %v831
      %837 = vmatprep.subr.mxu0 0.0
      %838 = vmatpush1.xpose.msra.mxu0 %v833
      %839 = vmatprep.subr.mxu0 0.0
      %840 = vmatpush1.xpose.msra.mxu0 0.0
      %841 = vmatprep.subr.mxu0 0.0
      %842 = vmatpush1.xpose.msra.mxu0 0.0
      %843 = vmatprep.subr.mxu0 0.0
      %844 = vmatpush1.xpose.msra.mxu0 0.0
      %845 = vmatprep.subr.mxu0 0.0
      %846 = vmatpush1.xpose.msra.mxu0 0.0
      %847 = vmatprep.subr.mxu0 0.0
      %848 = vmatpush1.xpose.msra.mxu0 0.0
      %849 = vmatprep.subr.mxu0 0.0
      %850 = vmatpush1.xpose.msra.mxu0 0.0
      %851 = vmatprep.subr.mxu0 0.0
      %852 = vmatpush1.xpose.msra.mxu0 0.0
      %853 = vmatprep.subr.mxu0 0.0
      %854 = vmatpush1.xpose.msra.mxu0 0.0
      %855 = vmatprep.subr.mxu0 0.0
      %856 = vmatpush1.xpose.msra.mxu0 0.0
      %857 = vmatprep.subr.mxu0 0.0
      %858 = vmatpush1.xpose.msra.mxu0 0.0
      %859 = vmatprep.subr.mxu0 0.0
      %860 = vmatpush1.xpose.msra.mxu0 0.0
      %861 = vmatprep.subr.mxu0 0.0
      %862 = vmatpush1.xpose.msra.mxu0 0.0
      %863 = vmatprep.subr.mxu0 0.0
      %864 = vmatpush1.xpose.msra.mxu0 0.0
      %865 = vmatprep.subr.mxu0 0.0
      %866 = vmatpush1.xpose.msra.mxu0 0.0
      %867 = vmatprep.subr.mxu0 0.0
      %868 = vmatpush1.xpose.msra.mxu0 0.0
      %869 = vmatprep.subr.mxu0 0.0
      %870 = vmatpush1.xpose.msra.mxu0 0.0
      %871 = vmatprep.subr.mxu0 0.0
      %872 = vmatpush1.xpose.msra.mxu0 0.0
      %873 = vmatprep.subr.mxu0 0.0
      %874 = vmatpush1.xpose.msra.mxu0 0.0
      %875 = vmatprep.subr.mxu0 0.0
      %876 = vmatpush1.xpose.msra.mxu0 0.0
      %877 = vmatprep.subr.mxu0 0.0
      %878 = vmatpush1.xpose.msra.mxu0 0.0
      %879 = vmatprep.subr.mxu0 0.0
      %880 = vmatpush1.xpose.msra.mxu0 0.0
      %881 = vmatprep.subr.mxu0 0.0
      %882 = vmatpush1.xpose.msra.mxu0 0.0
      %883 = vmatprep.subr.mxu0 0.0
      %884 = vmatpush1.xpose.msra.mxu0 0.0
      %885 = vmatprep.subr.mxu0 0.0
      %886 = vmatpush1.xpose.msra.mxu0 0.0
      %887 = vmatprep.subr.mxu0 0.0
      %888 = vmatpush1.xpose.msra.mxu0 0.0
      %889 = vmatprep.subr.mxu0 0.0
      %890 = vmatpush1.xpose.msra.mxu0 0.0
      %891 = vmatprep.subr.mxu0 0.0
      %892 = vmatpush1.xpose.msra.mxu0 0.0
      %893 = vmatprep.subr.mxu0 0.0
      %894 = vmatpush1.xpose.msra.mxu0 0.0
      %895 = vmatprep.subr.mxu0 0.0
      %896 = vmatpush1.xpose.msra.mxu0 0.0
      %897 = vmatprep.subr.mxu0 0.0
      %898 = vmatpush1.xpose.msra.mxu0 0.0
      %899 = vmatprep.mubr.f32.mxu0 0.0
      %900 = vmatmul.mubr.f32.gmra.mrb[0].mxu0 %v827
      %v901 = vpop.f32.mrb[0].mxu0
      %v902 = vadd.f32 0.0, %v901
      %v903 = vpop.f32.mrb[0].mxu0
      %904 = vmatprep.mubr.f32.mxu0 0.0
      %905 = vmatmul.mubr.f32.gmra.mrb[0].mxu0 %v829
      %v906 = vpop.f32.mrb[0].mxu0
      %v907 = vadd.f32 0.0, %v906
      %v908 = vpop.f32.mrb[0].mxu0
      %909 = vdwg.mxu0
      %v910 = vsel %vm307, %v902, -inf
      %911 = vmax.xlane.f32.xlu0 %v910
      %v912 = vpop.xlane.xlu0 %911
      %v913 = vsel %vm311, %v907, -inf
      %914 = vmax.xlane.f32.xlu0 %v913
      %v915 = vpop.xlane.xlu0 %914
      %v916 = vsub.f32 %v902, %v912
      %v917 = vsub.f32 %v907, %v915
      %v918 = vmul.f32 %v916, 1.442695
      %v919 = vpow.pop %v918
      %v920 = vmul.f32 %v917, 1.442695
      %v921 = vpow.pop %v920
      %v922 = vsel %vm307, %v919, 0.0
      %923 = vadd.xlane.f32.xlu0 %v922
      %v924 = vpop.xlane.xlu0 %923
      %v925 = vsel %vm311, %v921, 0.0
      %926 = vadd.xlane.f32.xlu0 %v925
      %v927 = vpop.xlane.xlu0 %926
      %928 = vrot.lane.b32.xlu0 %v215, 104
      %v929 = vpop.permute.xlu0 %928
      %930 = vrot.lane.b32.xlu0 %v216, 104
      %v931 = vpop.permute.xlu0 %930
      %v934 = vsel %vm307, %v919, 0
      %v937 = vsel %vm307, %v921, 0
      %v939 = vsel %vm333, %v931, 0
      %941 = vmatprep.subr.mxu0 0.0
      %942 = vmatpush1.msra.mxu0 %v929
      %943 = vmatprep.subr.mxu0 0.0
      %944 = vmatpush1.msra.mxu0 %v939
      %945 = vmatprep.subr.mxu0 0.0
      %946 = vmatpush1.msra.mxu0 0.0
      %947 = vmatprep.subr.mxu0 0.0
      %948 = vmatpush1.msra.mxu0 0.0
      %949 = vmatprep.subr.mxu0 0.0
      %950 = vmatpush1.msra.mxu0 0.0
      %951 = vmatprep.subr.mxu0 0.0
      %952 = vmatpush1.msra.mxu0 0.0
      %953 = vmatprep.subr.mxu0 0.0
      %954 = vmatpush1.msra.mxu0 0.0
      %955 = vmatprep.subr.mxu0 0.0
      %956 = vmatpush1.msra.mxu0 0.0
      %957 = vmatprep.subr.mxu0 0.0
      %958 = vmatpush1.msra.mxu0 0.0
      %959 = vmatprep.subr.mxu0 0.0
      %960 = vmatpush1.msra.mxu0 0.0
      %961 = vmatprep.subr.mxu0 0.0
      %962 = vmatpush1.msra.mxu0 0.0
      %963 = vmatprep.subr.mxu0 0.0
      %964 = vmatpush1.msra.mxu0 0.0
      %965 = vmatprep.subr.mxu0 0.0
      %966 = vmatpush1.msra.mxu0 0.0
      %967 = vmatprep.subr.mxu0 0.0
      %968 = vmatpush1.msra.mxu0 0.0
      %969 = vmatprep.subr.mxu0 0.0
      %970 = vmatpush1.msra.mxu0 0.0
      %971 = vmatprep.subr.mxu0 0.0
      %972 = vmatpush1.msra.mxu0 0.0
      %973 = vmatprep.subr.mxu0 0.0
      %974 = vmatpush1.msra.mxu0 0.0
      %975 = vmatprep.subr.mxu0 0.0
      %976 = vmatpush1.msra.mxu0 0.0
      %977 = vmatprep.subr.mxu0 0.0
      %978 = vmatpush1.msra.mxu0 0.0
      %979 = vmatprep.subr.mxu0 0.0
      %980 = vmatpush1.msra.mxu0 0.0
      %981 = vmatprep.subr.mxu0 0.0
      %982 = vmatpush1.msra.mxu0 0.0
      %983 = vmatprep.subr.mxu0 0.0
      %984 = vmatpush1.msra.mxu0 0.0
      %985 = vmatprep.subr.mxu0 0.0
      %986 = vmatpush1.msra.mxu0 0.0
      %987 = vmatprep.subr.mxu0 0.0
      %988 = vmatpush1.msra.mxu0 0.0
      %989 = vmatprep.subr.mxu0 0.0
      %990 = vmatpush1.msra.mxu0 0.0
      %991 = vmatprep.subr.mxu0 0.0
      %992 = vmatpush1.msra.mxu0 0.0
      %993 = vmatprep.subr.mxu0 0.0
      %994 = vmatpush1.msra.mxu0 0.0
      %995 = vmatprep.subr.mxu0 0.0
      %996 = vmatpush1.msra.mxu0 0.0
      %997 = vmatprep.subr.mxu0 0.0
      %998 = vmatpush1.msra.mxu0 0.0
      %999 = vmatprep.subr.mxu0 0.0
      %1000 = vmatpush1.msra.mxu0 0.0
      %1001 = vmatprep.subr.mxu0 0.0
      %1002 = vmatpush1.msra.mxu0 0.0
      %1003 = vmatprep.subr.mxu0 0.0
      %1004 = vmatpush1.msra.mxu0 0.0
      %1005 = vmatprep.mubr.f32.mxu0 0.0
      %1006 = vmatmul.mubr.f32.gmra.mrb[0].mxu0 %v934
      %v1007 = vpop.f32.mrb[0].mxu0
      %v1008 = vadd.f32 0.0, %v1007
      %v1009 = vpop.f32.mrb[0].mxu0
      %1010 = vmatprep.mubr.f32.mxu0 0.0
      %1011 = vmatmul.mubr.f32.gmra.mrb[0].mxu0 %v937
      %v1012 = vpop.f32.mrb[0].mxu0
      %v1013 = vadd.f32 0.0, %v1012
      %v1014 = vpop.f32.mrb[0].mxu0
      %1015 = vdwg.mxu0
      %v1016 = vrcp.pop %v924
      %v1017 = vmul.f32 %v1008, %v1016
      %v1018 = vrcp.pop %v927
      %v1019 = vmul.f32 %v1013, %v1018
      %1022 = vrot.lane.b32.xlu0 %v615, 8
      %v1023 = vpop.permute.xlu0 %1022
      %1024 = vrot.lane.b32.xlu0 %v617, 8
      %v1025 = vpop.permute.xlu0 %1024
      %1030 = vrot.lane.b32.xlu0 %v816, 16
      %v1031 = vpop.permute.xlu0 %1030
      %1032 = vrot.lane.b32.xlu0 %v818, 16
      %v1033 = vpop.permute.xlu0 %1032
      %1038 = vrot.lane.b32.xlu0 %v1017, 24
      %v1039 = vpop.permute.xlu0 %1038
      %1040 = vrot.lane.b32.xlu0 %v1019, 24
      %v1041 = vpop.permute.xlu0 %1040
      %v1044 = vsel %vm219, %v413, %v1023
      %v1045 = vsel %vm219, %v415, %v1025
      %vm1046 = vcmask 130048
      %v1047 = vsel %vm1046, %v1044, %v1031
      %v1048 = vsel %vm1046, %v1045, %v1033
      %vm1049 = vcmask 195584
      %v1050 = vsel %vm1049, %v1047, %v1039
      %v1051 = vsel %vm1049, %v1048, %v1041
      %vm1052 = vcmask 261120
      %1053 = vst.msk [vmem:[%s210] sm:$0xff] %vm1052, %v1050
      %vm1054 = vcmask 253952
      %1055 = vst.msk [vmem:[%s210 + $0x8] sm:$0x1] %vm1054, %v1051
      %p1056 = scmp.lt.s32.totalorder %s14, 1
      %s1057 = scalar_select %p1056, %s14, 1
      %s1058 = smul.addr %s1057, 2
      %s1059 = smul.addr %s1058, 8
      %s1060 = scalar_lea.vmem %s3, %s1059
      // Predicated region
      $region33: #{transformer_forward.11} parent=31 // pred_check
        %p1061 = pneg %p110
      $region34: #{transformer_forward.11} parent=31 // pred_check_branch
        %1063 = sbr.rel (%p1061) target = $region36
      $region35: #{transformer_forward.11} parent=31 // pred_region
        _
      $region36: #{transformer_forward.11} parent=31 // pred_fallthru
        _
    $region32: #{transformer_forward.11} parent=5 // pred_fallthru
      _
    %p1064 = scmp.le.s32.totalorder 2, %s9
    // Predicated region
    $region37: #{transformer_forward.11} parent=5 // pred_check
      %p1065 = pneg %p1064
    $region38: #{transformer_forward.11} parent=5 // pred_check_branch
      %1067 = sbr.rel (%p1065) target = $region40
    $region39: #{transformer_forward.11} parent=5 // pred_region
      %s1068 = ssub.s32 %s9, 2
      // Predicated region
      $region41: #{transformer_forward.11} parent=39 // pred_check
        %p1069 = pneg %p116
      $region42: #{transformer_forward.11} parent=39 // pred_check_branch
        %1071 = sbr.rel (%p1069) target = $region44
      $region43: #{transformer_forward.11} parent=39 // pred_region
        %p1072 = scmp.lt.s32.totalorder %s15, 1
        %s1073 = scalar_select %p1072, %s15, 1
        %s1074 = smul.addr %s1073, 2
        %s1075 = smul.addr %s1074, 8
        %s1076 = scalar_lea.vmem %s3, %s1075
      $region44: #{transformer_forward.11} parent=39 // pred_fallthru
        _
    $region40: #{transformer_forward.11} parent=5 // pred_fallthru
      _
  $region6: #{transformer_forward.11} parent=0 // loop_footer
    %s13 = sadd.s32 1, %s9
  $region7: #{transformer_forward.11} parent=0 // loop_footer_branch
    %8 = sbr.rel target = $region3
  $region8: #{transformer_forward.11} parent=0 // loop_exit
    _

// kernel: transformer_forward.13
$region0: #{transformer_forward.13}
  #allocation0 [shape = 'u32[]', space=smem, size = 0x4, offset = 0x4, fixed_abs, tag = 'smem constant byte address 0x4 - core index']
  #allocation1 [shape = 'u32[144,128]{1,0:T(1,128)}', space=vmem, size = 0x12000, scoped, tag = 'internal scratch']
  %s0 = inlined_call_operand.vmem [shape: f32[18,32], index: 0, kind: input, shape index: {}]
  %s1 = inlined_call_operand.vmem [shape: f32[32,64], index: 1, kind: input, shape index: {}]
  %s2 = inlined_call_operand.vmem [shape: f32[1,64], index: 2, kind: input, shape index: {}]
  %s3 = inlined_call_operand.vmem [shape: f32[64,32], index: 3, kind: input, shape index: {}]
  %s4 = inlined_call_operand.vmem [shape: f32[1,32], index: 4, kind: input, shape index: {}]
  %s5 = inlined_call_operand.vmem [shape: f32[1,32], index: 5, kind: input, shape index: {}]
  %s6 = inlined_call_operand.vmem [shape: f32[1,32], index: 6, kind: input, shape index: {}]
  %s7 = inlined_call_operand.vmem [shape: f32[18,32], index: 7, kind: output, shape index: {}]
  %s8 = sld [smem:[#allocation0]]
  $region38: #{transformer_forward.13} parent=0
    _
  %s10 = ssub.s32 1, %s8
  %s11 = scalar_select 0, %s10, %s8
  // Predicated region
  $region2: #{transformer_forward.13} parent=0 // pred_check
    _
  $region3: #{transformer_forward.13} parent=0 // pred_check_branch
    %13 = sbr.rel (0) target = $region5
  $region4: #{transformer_forward.13} parent=0 // pred_region
    _
  $region5: #{transformer_forward.13} parent=0 // pred_fallthru
    _
  // Predicated region
  $region6: #{transformer_forward.13} parent=0 // pred_check
    _
  $region7: #{transformer_forward.13} parent=0 // pred_check_branch
    %15 = sbr.rel (0) target = $region9
  $region8: #{transformer_forward.13} parent=0 // pred_region
    _
  $region9: #{transformer_forward.13} parent=0 // pred_fallthru
    _
  // Predicated region
  $region10: #{transformer_forward.13} parent=0 // pred_check
    _
  $region11: #{transformer_forward.13} parent=0 // pred_check_branch
    %17 = sbr.rel (0) target = $region13
  $region12: #{transformer_forward.13} parent=0 // pred_region
    _
  $region13: #{transformer_forward.13} parent=0 // pred_fallthru
    _
  // Predicated region
  $region14: #{transformer_forward.13} parent=0 // pred_check
    _
  $region15: #{transformer_forward.13} parent=0 // pred_check_branch
    %19 = sbr.rel (0) target = $region17
  $region16: #{transformer_forward.13} parent=0 // pred_region
    _
  $region17: #{transformer_forward.13} parent=0 // pred_fallthru
    _
  // Predicated region
  $region18: #{transformer_forward.13} parent=0 // pred_check
    _
  $region19: #{transformer_forward.13} parent=0 // pred_check_branch
    %21 = sbr.rel (0) target = $region21
  $region20: #{transformer_forward.13} parent=0 // pred_region
    _
  $region21: #{transformer_forward.13} parent=0 // pred_fallthru
    _
  // Predicated region
  $region22: #{transformer_forward.13} parent=0 // pred_check
    _
  $region23: #{transformer_forward.13} parent=0 // pred_check_branch
    %23 = sbr.rel (0) target = $region25
  $region24: #{transformer_forward.13} parent=0 // pred_region
    _
  $region25: #{transformer_forward.13} parent=0 // pred_fallthru
    _
  // Predicated region
  $region26: #{transformer_forward.13} parent=0 // pred_check
    _
  $region27: #{transformer_forward.13} parent=0 // pred_check_branch
    %25 = sbr.rel (0) target = $region29
  $region28: #{transformer_forward.13} parent=0 // pred_region
    _
  $region29: #{transformer_forward.13} parent=0 // pred_fallthru
    _
  %v26 = vld [vmem:[%s0] sm:$0xff]
  %v27 = vld [vmem:[%s0 + $0x8] sm:$0xff]
  %v28 = vld [vmem:[%s0 + $0x10] sm:$0x3]
  %v29 = vld [vmem:[%s1] sm:$0xff]
  %v30 = vld [vmem:[%s1 + $0x8] sm:$0xff]
  %v31 = vld [vmem:[%s1 + $0x10] sm:$0xff]
  %v32 = vld [vmem:[%s1 + $0x18] sm:$0xff]
  %v33 = vld [vmem:[%s2] sm:$0x1]
  %v35 = vlaneseq
  %v36 = vshrl.u32 %v35, 7
  %v37 = vsub.s32 0, %v36
  %v38 = vrot.slane %v33, %v37
  %vm40 = vcmask 261120
  %v42 = vsel %vm40, %v26, 0
  %v45 = vsel %vm40, %v27, 0
  %v48 = vsel %vm40, %v28, 0
  %50 = vmatprep.subr.mxu0 0.0
  %51 = vmatpush1.msra.mxu0 %v29
  %52 = vmatprep.subr.mxu0 0.0
  %53 = vmatpush1.msra.mxu0 %v30
  %54 = vmatprep.subr.mxu0 0.0
  %55 = vmatpush1.msra.mxu0 %v31
  %56 = vmatprep.subr.mxu0 0.0
  %57 = vmatpush1.msra.mxu0 %v32
  %58 = vmatprep.subr.mxu0 0.0
  %59 = vmatpush1.msra.mxu0 0.0
  %60 = vmatprep.subr.mxu0 0.0
  %61 = vmatpush1.msra.mxu0 0.0
  %62 = vmatprep.subr.mxu0 0.0
  %63 = vmatpush1.msra.mxu0 0.0
  %64 = vmatprep.subr.mxu0 0.0
  %65 = vmatpush1.msra.mxu0 0.0
  %66 = vmatprep.subr.mxu0 0.0
  %67 = vmatpush1.msra.mxu0 0.0
  %68 = vmatprep.subr.mxu0 0.0
  %69 = vmatpush1.msra.mxu0 0.0
  %70 = vmatprep.subr.mxu0 0.0
  %71 = vmatpush1.msra.mxu0 0.0
  %72 = vmatprep.subr.mxu0 0.0
  %73 = vmatpush1.msra.mxu0 0.0
  %74 = vmatprep.subr.mxu0 0.0
  %75 = vmatpush1.msra.mxu0 0.0
  %76 = vmatprep.subr.mxu0 0.0
  %77 = vmatpush1.msra.mxu0 0.0
  %78 = vmatprep.subr.mxu0 0.0
  %79 = vmatpush1.msra.mxu0 0.0
  %80 = vmatprep.subr.mxu0 0.0
  %81 = vmatpush1.msra.mxu0 0.0
  %82 = vmatprep.subr.mxu0 0.0
  %83 = vmatpush1.msra.mxu0 0.0
  %84 = vmatprep.subr.mxu0 0.0
  %85 = vmatpush1.msra.mxu0 0.0
  %86 = vmatprep.subr.mxu0 0.0
  %87 = vmatpush1.msra.mxu0 0.0
  %88 = vmatprep.subr.mxu0 0.0
  %89 = vmatpush1.msra.mxu0 0.0
  %90 = vmatprep.subr.mxu0 0.0
  %91 = vmatpush1.msra.mxu0 0.0
  %92 = vmatprep.subr.mxu0 0.0
  %93 = vmatpush1.msra.mxu0 0.0
  %94 = vmatprep.subr.mxu0 0.0
  %95 = vmatpush1.msra.mxu0 0.0
  %96 = vmatprep.subr.mxu0 0.0
  %97 = vmatpush1.msra.mxu0 0.0
  %98 = vmatprep.subr.mxu0 0.0
  %99 = vmatpush1.msra.mxu0 0.0
  %100 = vmatprep.subr.mxu0 0.0
  %101 = vmatpush1.msra.mxu0 0.0
  %102 = vmatprep.subr.mxu0 0.0
  %103 = vmatpush1.msra.mxu0 0.0
  %104 = vmatprep.subr.mxu0 0.0
  %105 = vmatpush1.msra.mxu0 0.0
  %106 = vmatprep.subr.mxu0 0.0
  %107 = vmatpush1.msra.mxu0 0.0
  %108 = vmatprep.subr.mxu0 0.0
  %109 = vmatpush1.msra.mxu0 0.0
  %110 = vmatprep.subr.mxu0 0.0
  %111 = vmatpush1.msra.mxu0 0.0
  %112 = vmatprep.subr.mxu0 0.0
  %113 = vmatpush1.msra.mxu0 0.0
  %114 = vmatprep.mubr.f32.mxu0 0.0
  %115 = vmatmul.mubr.f32.gmra.mrb[0].mxu0 %v42
  %v116 = vpop.f32.mrb[0].mxu0
  %v117 = vadd.f32 %v38, %v116
  %v118 = vpop.f32.mrb[0].mxu0
  %119 = vmatprep.mubr.f32.mxu0 0.0
  %120 = vmatmul.mubr.f32.gmra.mrb[0].mxu0 %v45
  %v121 = vpop.f32.mrb[0].mxu0
  %v122 = vadd.f32 %v38, %v121
  %v123 = vpop.f32.mrb[0].mxu0
  %124 = vmatprep.mubr.f32.mxu0 0.0
  %125 = vmatmul.mubr.f32.gmra.mrb[0].mxu0 %v48
  %v126 = vpop.f32.mrb[0].mxu0
  %v127 = vadd.f32 %v38, %v126
  %v128 = vpop.f32.mrb[0].mxu0
  %129 = vdwg.mxu0
  %v130 = vmax.f32 %v117, 0.0
  %v131 = vmax.f32 %v122, 0.0
  %v132 = vmax.f32 %v127, 0.0
  %v133 = vld [vmem:[%s3] sm:$0xff]
  %v134 = vld [vmem:[%s3 + $0x8] sm:$0xff]
  %v135 = vld [vmem:[%s3 + $0x10] sm:$0xff]
  %v136 = vld [vmem:[%s3 + $0x18] sm:$0xff]
  %v137 = vld [vmem:[%s3 + $0x20] sm:$0xff]
  %v138 = vld [vmem:[%s3 + $0x28] sm:$0xff]
  %v139 = vld [vmem:[%s3 + $0x30] sm:$0xff]
  %v140 = vld [vmem:[%s3 + $0x38] sm:$0xff]
  %v141 = vld [vmem:[%s4] sm:$0x1]
  %v143 = vlaneseq
  %v144 = vshrl.u32 %v143, 7
  %v145 = vsub.s32 0, %v144
  %v146 = vrot.slane %v141, %v145
  %vm148 = vcmask 523264
  %v150 = vsel %vm148, %v130, 0
  %v153 = vsel %vm148, %v131, 0
  %v156 = vsel %vm148, %v132, 0
  %158 = vmatprep.subr.mxu0 0.0
  %159 = vmatpush1.msra.mxu0 %v133
  %160 = vmatprep.subr.mxu0 0.0
  %161 = vmatpush1.msra.mxu0 %v134
  %162 = vmatprep.subr.mxu0 0.0
  %163 = vmatpush1.msra.mxu0 %v135
  %164 = vmatprep.subr.mxu0 0.0
  %165 = vmatpush1.msra.mxu0 %v136
  %166 = vmatprep.subr.mxu0 0.0
  %167 = vmatpush1.msra.mxu0 %v137
  %168 = vmatprep.subr.mxu0 0.0
  %169 = vmatpush1.msra.mxu0 %v138
  %170 = vmatprep.subr.mxu0 0.0
  %171 = vmatpush1.msra.mxu0 %v139
  %172 = vmatprep.subr.mxu0 0.0
  %173 = vmatpush1.msra.mxu0 %v140
  %174 = vmatprep.subr.mxu0 0.0
  %175 = vmatpush1.msra.mxu0 0.0
  %176 = vmatprep.subr.mxu0 0.0
  %177 = vmatpush1.msra.mxu0 0.0
  %178 = vmatprep.subr.mxu0 0.0
  %179 = vmatpush1.msra.mxu0 0.0
  %180 = vmatprep.subr.mxu0 0.0
  %181 = vmatpush1.msra.mxu0 0.0
  %182 = vmatprep.subr.mxu0 0.0
  %183 = vmatpush1.msra.mxu0 0.0
  %184 = vmatprep.subr.mxu0 0.0
  %185 = vmatpush1.msra.mxu0 0.0
  %186 = vmatprep.subr.mxu0 0.0
  %187 = vmatpush1.msra.mxu0 0.0
  %188 = vmatprep.subr.mxu0 0.0
  %189 = vmatpush1.msra.mxu0 0.0
  %190 = vmatprep.subr.mxu0 0.0
  %191 = vmatpush1.msra.mxu0 0.0
  %192 = vmatprep.subr.mxu0 0.0
  %193 = vmatpush1.msra.mxu0 0.0
  %194 = vmatprep.subr.mxu0 0.0
  %195 = vmatpush1.msra.mxu0 0.0
  %196 = vmatprep.subr.mxu0 0.0
  %197 = vmatpush1.msra.mxu0 0.0
  %198 = vmatprep.subr.mxu0 0.0
  %199 = vmatpush1.msra.mxu0 0.0
  %200 = vmatprep.subr.mxu0 0.0
  %201 = vmatpush1.msra.mxu0 0.0
  %202 = vmatprep.subr.mxu0 0.0
  %203 = vmatpush1.msra.mxu0 0.0
  %204 = vmatprep.subr.mxu0 0.0
  %205 = vmatpush1.msra.mxu0 0.0
  %206 = vmatprep.subr.mxu0 0.0
  %207 = vmatpush1.msra.mxu0 0.0
  %208 = vmatprep.subr.mxu0 0.0
  %209 = vmatpush1.msra.mxu0 0.0
  %210 = vmatprep.subr.mxu0 0.0
  %211 = vmatpush1.msra.mxu0 0.0
  %212 = vmatprep.subr.mxu0 0.0
  %213 = vmatpush1.msra.mxu0 0.0
  %214 = vmatprep.subr.mxu0 0.0
  %215 = vmatpush1.msra.mxu0 0.0
  %216 = vmatprep.subr.mxu0 0.0
  %217 = vmatpush1.msra.mxu0 0.0
  %218 = vmatprep.subr.mxu0 0.0
  %219 = vmatpush1.msra.mxu0 0.0
  %220 = vmatprep.subr.mxu0 0.0
  %221 = vmatpush1.msra.mxu0 0.0
  %222 = vmatprep.mubr.f32.mxu0 0.0
  %223 = vmatmul.mubr.f32.gmra.mrb[0].mxu0 %v150
  %v224 = vpop.f32.mrb[0].mxu0
  %v225 = vadd.f32 %v146, %v224
  %v226 = vpop.f32.mrb[0].mxu0
  %227 = vmatprep.mubr.f32.mxu0 0.0
  %228 = vmatmul.mubr.f32.gmra.mrb[0].mxu0 %v153
  %v229 = vpop.f32.mrb[0].mxu0
  %v230 = vadd.f32 %v146, %v229
  %v231 = vpop.f32.mrb[0].mxu0
  %232 = vmatprep.mubr.f32.mxu0 0.0
  %233 = vmatmul.mubr.f32.gmra.mrb[0].mxu0 %v156
  %v234 = vpop.f32.mrb[0].mxu0
  %v235 = vadd.f32 %v146, %v234
  %v236 = vpop.f32.mrb[0].mxu0
  %237 = vdwg.mxu0
  %v238 = vadd.f32 %v225, %v26
  %v239 = vadd.f32 %v230, %v27
  %v240 = vadd.f32 %v235, %v28
  %v241 = vld [vmem:[%s5] sm:$0x1]
  %v242 = vld [vmem:[%s6] sm:$0x1]
  %v243 = vsel %vm40, %v238, 0.0
  %244 = vadd.xlane.f32.xlu0 %v243
  %v245 = vpop.xlane.xlu0 %244
  %v246 = vsel %vm40, %v239, 0.0
  %247 = vadd.xlane.f32.xlu0 %v246
  %v248 = vpop.xlane.xlu0 %247
  %vm249 = vcmask 254976
  %v250 = vsel %vm249, %v240, 0.0
  %251 = vadd.xlane.f32.xlu0 %v250
  %v252 = vpop.xlane.xlu0 %251
  %v253 = vrcp.pop 32.0
  %v254 = vmul.f32 %v245, %v253
  %v255 = vmul.f32 %v248, %v253
  %v256 = vmul.f32 %v252, %v253
  %v257 = vsub.f32 %v238, %v254
  %v258 = vsub.f32 %v239, %v255
  %v259 = vsub.f32 %v240, %v256
  %v260 = vmul.f32 %v257, %v257
  %v261 = vmul.f32 %v258, %v258
  %v262 = vmul.f32 %v259, %v259
  %v263 = vsel %vm40, %v260, 0.0
  %264 = vadd.xlane.f32.xlu0 %v263
  %v265 = vpop.xlane.xlu0 %264
  %v266 = vsel %vm40, %v261, 0.0
  %267 = vadd.xlane.f32.xlu0 %v266
  %v268 = vpop.xlane.xlu0 %267
  %v269 = vsel %vm249, %v262, 0.0
  %270 = vadd.xlane.f32.xlu0 %v269
  %v271 = vpop.xlane.xlu0 %270
  %v272 = vmul.f32 %v265, %v253
  %v273 = vmul.f32 %v268, %v253
  %v274 = vmul.f32 %v271, %v253
  %v275 = vadd.f32 %v272, 1e-05
  %v276 = vadd.f32 %v273, 1e-05
  %v277 = vadd.f32 %v274, 1e-05
  %v278 = vrsqrt.pop %v275
  %v279 = vrsqrt.pop %v276
  %v280 = vrsqrt.pop %v277
  %v281 = vmul.f32 %v257, %v278
  %v282 = vmul.f32 %v258, %v279
  %v283 = vmul.f32 %v259, %v280
  %v285 = vlaneseq
  %v286 = vshrl.u32 %v285, 7
  %v287 = vsub.s32 0, %v286
  %v288 = vrot.slane %v241, %v287
  %v290 = vmul.f32 %v281, %v288
  %v291 = vmul.f32 %v282, %v288
  %v292 = vmul.f32 %v283, %v288
  %v294 = vlaneseq
  %v295 = vshrl.u32 %v294, 7
  %v296 = vsub.s32 0, %v295
  %v297 = vrot.slane %v242, %v296
  %v299 = vadd.f32 %v290, %v297
  %v300 = vadd.f32 %v291, %v297
  %v301 = vadd.f32 %v292, %v297
  %302 = vst.msk [vmem:[%s7] sm:$0xff] %vm40, %v299
  %303 = vst.msk [vmem:[%s7 + $0x8] sm:$0xff] %vm40, %v300
  %304 = vst.msk [vmem:[%s7 + $0x10] sm:$0x3] %vm249, %v301
  // Predicated region
  $region30: #{transformer_forward.13} parent=0 // pred_check
    _
  $region31: #{transformer_forward.13} parent=0 // pred_check_branch
    %306 = sbr.rel (0) target = $region33
  $region32: #{transformer_forward.13} parent=0 // pred_region
    _
  $region33: #{transformer_forward.13} parent=0 // pred_fallthru
    _
  // Predicated region
  $region34: #{transformer_forward.13} parent=0 // pred_check
    _
  $region35: #{transformer_forward.13} parent=0 // pred_check_branch
    %308 = sbr.rel (0) target = $region37
  $region36: #{transformer_forward.13} parent=0 // pred_region
    _
  $region37: #{transformer_forward.13} parent=0 // pred_fallthru
    _

</llo_original>
